<compile_context>
chip_gen: v7x
topology: tpu7x:2x2x1
jax: 0.10.0
libtpu: 0.0.40
codegen_flags: <defaults>
</compile_context>

<pallas_src>
import jax
import jax.numpy as jnp
import numpy as np
from jax.experimental import pallas as pl
from jax.experimental.pallas import tpu as pltpu


def _round_up(x, m):
    return ((x + m - 1) // m) * m


def gating_kernel(x_ref, w1_ref, b1_ref, w2_ref, b2_ref, w3_ref, b3_ref, o_ref):
    # x arrives as f32 straight from HBM; cast to bf16 on the VPU right before
    # the MXU (biases and all epilogue math stay f32).
    x = x_ref[...].astype(jnp.bfloat16)

    # Layer 1: Linear(input_dim, hidden) + ReLU
    h1 = jnp.dot(x, w1_ref[...], preferred_element_type=jnp.float32) + b1_ref[...]
    h1 = jnp.maximum(h1, 0.0)

    # Layer 2: Linear(hidden, hidden) + ReLU
    h2 = jnp.dot(h1.astype(jnp.bfloat16), w2_ref[...],
                 preferred_element_type=jnp.float32) + b2_ref[...]
    h2 = jnp.maximum(h2, 0.0)

    # Layer 3: Linear(hidden, num_experts)
    logits = jnp.dot(h2.astype(jnp.bfloat16), w3_ref[...],
                     preferred_element_type=jnp.float32) + b3_ref[...]

    # Numerically stable softmax over experts. The max-subtraction also keeps
    # the garbage rows of a ragged final batch tile finite (their writes are
    # dropped by the pipeline). Divide via the EUP approx reciprocal.
    m = jnp.max(logits, axis=-1, keepdims=True)
    e = jnp.exp(logits - m)
    denom = jnp.sum(e, axis=-1, keepdims=True)
    o_ref[...] = (e * pl.reciprocal(denom, approx=True)).astype(o_ref.dtype)


def inner_eye_gating(x, params, *, tile_b=512):
    """x: [B, input_dim] float32 -> [B, num_experts] float32 (rows sum to ~1)."""
    w1, b1, w2, b2, w3, b3 = params
    B, in_dim = x.shape
    hid = w1.shape[1]
    n_exp = w3.shape[1]

    # Weights are tiny (~0.7 MiB total as bf16): cast once here. Biases f32.
    w1b, w2b, w3b = (w.astype(jnp.bfloat16) for w in (w1, w2, w3))
    b1f, b2f, b3f = (b.astype(jnp.float32).reshape(1, -1) for b in (b1, b2, b3))

    # Batch tile: 16-aligned; capped so that small batches still produce >= 2
    # roughly balanced grid steps (v7x has two TensorCores; v5e/v6e are
    # unaffected). No padding of x — the ragged last block is handled by
    # Pallas via the cdiv grid.
    tb = max(16, min(tile_b, _round_up(pl.cdiv(B, 2), 16)))
    grid = (pl.cdiv(B, tb),)

    # Weights/biases live fully in VMEM every grid step (constant index_map);
    # only the batch dimension of x / out is tiled.
    full = lambda shape: pl.BlockSpec(shape, lambda i: (0, 0))

    weight_elems = in_dim * hid + hid * hid + hid * n_exp
    cost = pl.CostEstimate(
        flops=2 * B * weight_elems,
        transcendentals=B * n_exp,
        bytes_accessed=B * (in_dim + n_exp) * 4       # x read + out write (f32)
        + weight_elems * 2                            # bf16 weights
        + (2 * hid + n_exp) * 4,                      # f32 biases
    )

    out = pl.pallas_call(
        gating_kernel,
        out_shape=jax.ShapeDtypeStruct((B, n_exp), jnp.float32),
        grid_spec=pltpu.PrefetchScalarGridSpec(
            num_scalar_prefetch=0,
            grid=grid,
            in_specs=[
                pl.BlockSpec((tb, in_dim), lambda i: (i, 0)),  # x tile (f32)
                full((in_dim, hid)),   # w1 (bf16)
                full((1, hid)),        # b1 (f32)
                full((hid, hid)),      # w2 (bf16)
                full((1, hid)),        # b2 (f32)
                full((hid, n_exp)),    # w3 (bf16)
                full((1, n_exp)),      # b3 (f32)
            ],
            out_specs=pl.BlockSpec((tb, n_exp), lambda i: (i, 0)),
        ),
        compiler_params=pltpu.CompilerParams(
            dimension_semantics=("parallel",),   # batch steps shard across TCs (v7x)
            vmem_limit_bytes=32 * 1024 * 1024,   # non-binding; safe on v5e/v6e/v7x
        ),
        cost_estimate=cost,
    )(x, w1b, b1f, w2b, b2f, w3b, b3f)

    return out


def init_params(key, input_dim=384, hidden_dim=256, num_experts=32):
    """Deterministic init mirroring nn.Linear's U(-1/sqrt(fan_in), 1/sqrt(fan_in)).
    Weights stored as [in, out] (transposed relative to PyTorch)."""
    ks = jax.random.split(key, 6)

    def lin(kw, kb, fan_in, fan_out):
        bound = 1.0 / np.sqrt(fan_in)
        w = jax.random.uniform(kw, (fan_in, fan_out), jnp.float32, -bound, bound)
        b = jax.random.uniform(kb, (1, fan_out), jnp.float32, -bound, bound)
        return w, b

    w1, b1 = lin(ks[0], ks[1], input_dim, hidden_dim)
    w2, b2 = lin(ks[2], ks[3], hidden_dim, hidden_dim)
    w3, b3 = lin(ks[4], ks[5], hidden_dim, num_experts)
    return (w1, b1, w2, b2, w3, b3)


def reference_forward(x, params):
    """Pure-JAX f32 reference for the forward pass."""
    w1, b1, w2, b2, w3, b3 = params
    h1 = jnp.maximum(x @ w1 + b1, 0.0)
    h2 = jnp.maximum(h1 @ w2 + b2, 0.0)
    logits = h2 @ w3 + b3
    return jax.nn.softmax(logits, axis=-1)


# TODO(synk): train_step (Adam + CrossEntropyLoss backward) is training logic, not the
# forward pass, and is intentionally not translated to Pallas.

if __name__ == "__main__":
    INPUT_DIM, HIDDEN_DIM, NUM_EXPERTS = 384, 256, 32
    BATCH = 200  # deliberately not tile-aligned: exercises the ragged last block
                 # and produces 2 balanced grid steps (112 + 88 rows).

    key = jax.random.PRNGKey(0)
    kx, kp = jax.random.split(key)
    x = jax.random.normal(kx, (BATCH, INPUT_DIM), jnp.float32)
    params = init_params(kp, INPUT_DIM, HIDDEN_DIM, NUM_EXPERTS)

    out = jax.block_until_ready(inner_eye_gating(x, params))
    ref = jax.block_until_ready(reference_forward(x, params))

    # bf16 matmuls (f32 accumulate) + approx-reciprocal softmax => relaxed tolerances.
    # Note: rows sum to 1 only to ~1e-3 because of the approx reciprocal; renormalize
    # downstream if exact normalization is required.
    np.testing.assert_allclose(np.asarray(out), np.asarray(ref), rtol=5e-2, atol=5e-3)
    np.testing.assert_allclose(np.asarray(out).sum(-1), np.ones(BATCH), rtol=0, atol=5e-3)

    print("KERNEL_OK")
</pallas_src>

<mosaic_0001>
module attributes {stable_mosaic.version = 11 : i64} {
  func.func @gating_kernel(%arg0: i32, %arg1: memref<112x384xf32, #tpu.memory_space<vmem>>, %arg2: memref<384x256xbf16, #tpu.memory_space<vmem>>, %arg3: memref<1x256xf32, #tpu.memory_space<vmem>>, %arg4: memref<256x256xbf16, #tpu.memory_space<vmem>>, %arg5: memref<1x256xf32, #tpu.memory_space<vmem>>, %arg6: memref<256x32xbf16, #tpu.memory_space<vmem>>, %arg7: memref<1x32xf32, #tpu.memory_space<vmem>>, %arg8: memref<112x32xf32, #tpu.memory_space<vmem>>) attributes {dimension_semantics = [#tpu.dimension_semantics<parallel>], iteration_bounds = array<i64: 2>, scalar_prefetch = 0 : i64, scratch_operands = 0 : i64, tpu.core_type = #tpu.core_type<tc>, window_params = [{transform_indices = @transform_0, window_bounds = array<i64: 112, 384>}, {pipeline_mode = #tpu.pipeline_mode<synchronous>, transform_indices = @transform_1, window_bounds = array<i64: 384, 256>}, {pipeline_mode = #tpu.pipeline_mode<synchronous>, transform_indices = @transform_2, window_bounds = array<i64: 1, 256>}, {pipeline_mode = #tpu.pipeline_mode<synchronous>, transform_indices = @transform_3, window_bounds = array<i64: 256, 256>}, {pipeline_mode = #tpu.pipeline_mode<synchronous>, transform_indices = @transform_4, window_bounds = array<i64: 1, 256>}, {pipeline_mode = #tpu.pipeline_mode<synchronous>, transform_indices = @transform_5, window_bounds = array<i64: 256, 32>}, {pipeline_mode = #tpu.pipeline_mode<synchronous>, transform_indices = @transform_6, window_bounds = array<i64: 1, 32>}, {transform_indices = @transform_7, window_bounds = array<i64: 112, 32>}]} {
    %c0 = arith.constant 0 : index
    %c0_0 = arith.constant 0 : index
    %0 = vector.load %arg1[%c0, %c0_0] : memref<112x384xf32, #tpu.memory_space<vmem>>, vector<112x384xf32>
    %1 = arith.truncf %0 : vector<112x384xf32> to vector<112x384xbf16>
    %c0_1 = arith.constant 0 : index
    %c0_2 = arith.constant 0 : index
    %2 = vector.load %arg2[%c0_1, %c0_2] : memref<384x256xbf16, #tpu.memory_space<vmem>>, vector<384x256xbf16>
    %cst = arith.constant dense<0.000000e+00> : vector<112x256xf32>
    %3 = tpu.matmul %1, %2, %cst {dimension_numbers = #tpu.dot_dimension_numbers<[1], [0], [0], [1], [0, 0, 1, 1], [], []>} : vector<112x384xbf16>, vector<384x256xbf16>, vector<112x256xf32> -> vector<112x256xf32>
    %c0_3 = arith.constant 0 : index
    %c0_4 = arith.constant 0 : index
    %4 = vector.load %arg3[%c0_3, %c0_4] : memref<1x256xf32, #tpu.memory_space<vmem>>, vector<1x256xf32>
    %5 = vector.broadcast %4 : vector<1x256xf32> to vector<112x256xf32>
    %6 = arith.addf %3, %5 : vector<112x256xf32>
    %cst_5 = arith.constant 0.000000e+00 : f32
    %7 = vector.broadcast %cst_5 : f32 to vector<112x256xf32>
    %8 = arith.maximumf %6, %7 : vector<112x256xf32>
    %9 = arith.truncf %8 : vector<112x256xf32> to vector<112x256xbf16>
    %c0_6 = arith.constant 0 : index
    %c0_7 = arith.constant 0 : index
    %10 = vector.load %arg4[%c0_6, %c0_7] : memref<256x256xbf16, #tpu.memory_space<vmem>>, vector<256x256xbf16>
    %cst_8 = arith.constant dense<0.000000e+00> : vector<112x256xf32>
    %11 = tpu.matmul %9, %10, %cst_8 {dimension_numbers = #tpu.dot_dimension_numbers<[1], [0], [0], [1], [0, 0, 1, 1], [], []>} : vector<112x256xbf16>, vector<256x256xbf16>, vector<112x256xf32> -> vector<112x256xf32>
    %c0_9 = arith.constant 0 : index
    %c0_10 = arith.constant 0 : index
    %12 = vector.load %arg5[%c0_9, %c0_10] : memref<1x256xf32, #tpu.memory_space<vmem>>, vector<1x256xf32>
    %13 = vector.broadcast %12 : vector<1x256xf32> to vector<112x256xf32>
    %14 = arith.addf %11, %13 : vector<112x256xf32>
    %cst_11 = arith.constant 0.000000e+00 : f32
    %15 = vector.broadcast %cst_11 : f32 to vector<112x256xf32>
    %16 = arith.maximumf %14, %15 : vector<112x256xf32>
    %17 = arith.truncf %16 : vector<112x256xf32> to vector<112x256xbf16>
    %c0_12 = arith.constant 0 : index
    %c0_13 = arith.constant 0 : index
    %18 = vector.load %arg6[%c0_12, %c0_13] : memref<256x32xbf16, #tpu.memory_space<vmem>>, vector<256x32xbf16>
    %cst_14 = arith.constant dense<0.000000e+00> : vector<112x32xf32>
    %19 = tpu.matmul %17, %18, %cst_14 {dimension_numbers = #tpu.dot_dimension_numbers<[1], [0], [0], [1], [0, 0, 1, 1], [], []>} : vector<112x256xbf16>, vector<256x32xbf16>, vector<112x32xf32> -> vector<112x32xf32>
    %c0_15 = arith.constant 0 : index
    %c0_16 = arith.constant 0 : index
    %20 = vector.load %arg7[%c0_15, %c0_16] : memref<1x32xf32, #tpu.memory_space<vmem>>, vector<1x32xf32>
    %21 = vector.broadcast %20 : vector<1x32xf32> to vector<112x32xf32>
    %22 = arith.addf %19, %21 : vector<112x32xf32>
    %cst_17 = arith.constant dense<0xFF800000> : vector<112xf32>
    %23 = vector.multi_reduction <maximumf>, %22, %cst_17 [1] : vector<112x32xf32> to vector<112xf32>
    %24 = vector.shape_cast %23 : vector<112xf32> to vector<112x1xf32>
    %25 = vector.broadcast %24 : vector<112x1xf32> to vector<112x32xf32>
    %26 = arith.subf %22, %25 : vector<112x32xf32>
    %27 = math.exp %26 : vector<112x32xf32>
    %cst_18 = arith.constant dense<0.000000e+00> : vector<112xf32>
    %28 = vector.multi_reduction <add>, %27, %cst_18 [1] : vector<112x32xf32> to vector<112xf32>
    %29 = vector.shape_cast %28 : vector<112xf32> to vector<112x1xf32>
    %30 = tpu.reciprocal %29 {approx = true} : vector<112x1xf32> -> vector<112x1xf32>
    %31 = vector.broadcast %30 : vector<112x1xf32> to vector<112x32xf32>
    %32 = arith.mulf %27, %31 : vector<112x32xf32>
    %c0_19 = arith.constant 0 : index
    %c0_20 = arith.constant 0 : index
    %33 = vector.load %arg8[%c0_19, %c0_20] : memref<112x32xf32, #tpu.memory_space<vmem>>, vector<112x32xf32>
    tpu.vector_store %arg8[%c0_19, %c0_20], %32 {strides = array<i32>} : memref<112x32xf32, #tpu.memory_space<vmem>>, vector<112x32xf32>,
    return
  }
  func.func @transform_0(%arg0: i32) -> (i32, i32) {
    %c0_i32 = arith.constant 0 : i32
    %c0_i32_0 = arith.constant 0 : i32
    return %arg0, %c0_i32 : i32, i32
  }
  func.func @transform_1(%arg0: i32) -> (i32, i32) {
    %c0_i32 = arith.constant 0 : i32
    %c0_i32_0 = arith.constant 0 : i32
    %c0_i32_1 = arith.constant 0 : i32
    return %c0_i32, %c0_i32_0 : i32, i32
  }
  func.func @transform_2(%arg0: i32) -> (i32, i32) {
    %c0_i32 = arith.constant 0 : i32
    %c0_i32_0 = arith.constant 0 : i32
    %c0_i32_1 = arith.constant 0 : i32
    return %c0_i32, %c0_i32_0 : i32, i32
  }
  func.func @transform_3(%arg0: i32) -> (i32, i32) {
    %c0_i32 = arith.constant 0 : i32
    %c0_i32_0 = arith.constant 0 : i32
    %c0_i32_1 = arith.constant 0 : i32
    return %c0_i32, %c0_i32_0 : i32, i32
  }
  func.func @transform_4(%arg0: i32) -> (i32, i32) {
    %c0_i32 = arith.constant 0 : i32
    %c0_i32_0 = arith.constant 0 : i32
    %c0_i32_1 = arith.constant 0 : i32
    return %c0_i32, %c0_i32_0 : i32, i32
  }
  func.func @transform_5(%arg0: i32) -> (i32, i32) {
    %c0_i32 = arith.constant 0 : i32
    %c0_i32_0 = arith.constant 0 : i32
    %c0_i32_1 = arith.constant 0 : i32
    return %c0_i32, %c0_i32_0 : i32, i32
  }
  func.func @transform_6(%arg0: i32) -> (i32, i32) {
    %c0_i32 = arith.constant 0 : i32
    %c0_i32_0 = arith.constant 0 : i32
    %c0_i32_1 = arith.constant 0 : i32
    return %c0_i32, %c0_i32_0 : i32, i32
  }
  func.func @transform_7(%arg0: i32) -> (i32, i32) {
    %c0_i32 = arith.constant 0 : i32
    %c0_i32_0 = arith.constant 0 : i32
    return %arg0, %c0_i32 : i32, i32
  }
}

</mosaic_0001>

<llo_original>
// kernel: tpu_custom_call.1
$region0: #{tpu_custom_call.1}
  #allocation0 [shape = 'u32[]', space=smem, size = 0x4, offset = 0x4, fixed_abs, tag = 'smem constant byte address 0x4 - core index']
  #allocation1 [shape = 'u32[144,128]{1,0:T(1,128)}', space=vmem, size = 0x12000, scoped, tag = 'internal scratch']
  %s0 = inlined_call_operand.hbm [shape: f32[200,384], index: 0, kind: input, shape index: {}]
  %s1 = inlined_call_operand.hbm [shape: bf16[384,256], index: 1, kind: input, shape index: {}]
  %s2 = inlined_call_operand.vmem [shape: f32[1,256], index: 2, kind: input, shape index: {}]
  %s3 = inlined_call_operand.hbm [shape: bf16[256,256], index: 3, kind: input, shape index: {}]
  %s4 = inlined_call_operand.vmem [shape: f32[1,256], index: 4, kind: input, shape index: {}]
  %s5 = inlined_call_operand.vmem [shape: bf16[256,32], index: 5, kind: input, shape index: {}]
  %s6 = inlined_call_operand.vmem [shape: f32[1,32], index: 6, kind: input, shape index: {}]
  %s7 = inlined_call_operand.vmem [shape: f32[200,32], index: 7, kind: output, shape index: {}]
  %s8 = sld [smem:[#allocation0]]
  $region121: #{tpu_custom_call.1} parent=0
    _
  %s10 = ssub.s32 1, %s8
  %s11 = scalar_select 0, %s10, %s8
  $region1: #{tpu_custom_call.1} parent=0
    #allocation2 [shape = 'u8[344064]{0}', space=vmem, size = 0x54000, scoped, tag = 'input window, operand 0']
    #allocation3 [shape = 's32[2]{0}', space=sflag, size = 0x8, scoped, tag = 'scoped memory for tpu_custom_call.1']
    #allocation4 [shape = 'u8[196608]{0}', space=vmem, size = 0x30000, scoped, tag = 'input window, operand 1, single buffered']
    #allocation5 [shape = 's32[1]{0}', space=sflag, size = 0x4, scoped, tag = 'scoped memory for tpu_custom_call.1']
    #allocation6 [shape = 'u8[131072]{0}', space=vmem, size = 0x20000, scoped, tag = 'input window, operand 3, single buffered']
    #allocation7 [shape = 'u8[114688]{0}', space=vmem, size = 0x1c000, scoped, tag = 'output window, operand 0']
    %12 = vsyncpa [#allocation3], 0
    %s13 = scalar_lea.sflag [#allocation3], 1
    %14 = vsyncpa %s13, 0
    %15 = vsyncpa [#allocation5], 0
    loop: start=0, step=1, limit=4
    $region2: #{tpu_custom_call.1} parent=1 // loop_pre_header
      _
    $region3: #{tpu_custom_call.1} parent=1 // loop_header
      %s17 = sphi 0, %s21
      %p18 = scmp.ge.s32.totalorder %s17, 4
      %s27 = sphi 0, %s29
      %s30 = sphi 0, %s27
      %s31 = sphi 0, %s30
      %s47 = sphi 0, %s31
      %s51 = sphi 0, %s51
      %s53 = sphi 0, %s51
      %s54 = sphi 0, %s53
      %s68 = sphi 0, %s54
      %s72 = sphi 0, %s72
      %s74 = sphi 0, %s72
      %s75 = sphi 0, %s74
      %s89 = sphi 0, %s75
      %s93 = sphi 0, %s93
      %s95 = sphi 0, %s93
      %s96 = sphi 0, %s95
      %s110 = sphi 0, %s96
      %s114 = sphi 0, %s114
      %s116 = sphi 0, %s114
      %s117 = sphi 0, %s116
      %s131 = sphi 0, %s117
      %s135 = sphi 0, %s135
      %s137 = sphi 0, %s135
      %s138 = sphi 0, %s137
      %s152 = sphi 0, %s138
      %s156 = sphi 0, %s156
      %s158 = sphi 0, %s156
      %s159 = sphi 0, %s158
      %s173 = sphi 0, %s159
      %s179 = sphi 0, %s181
      %s182 = sphi 0, %s179
      %s183 = sphi 0, %s182
      %s199 = sphi 0, %s183
    $region4: #{tpu_custom_call.1} parent=1 // loop_header_branch
      %20 = sbr.rel (%p18) target = $region8
    $region5: #{tpu_custom_call.1} parent=1 // loop_body
      %s22 = ssub.s32 %s17, 1
      %s23 = ssub.s32 %s17, 2
      %s24 = sadd.s32 %s17, 1
      %s25 = ssub.s32 %s17, %s24
      %p26 = scmp.eq.s32.totalorder %s25, 0
      %s28 = sadd.s32 %s27, 1
      %s29 = scalar_select %p26, %s27, %s28
      %p32 = pneg %p26
      %p33 = scmp.eq.s32.totalorder %s17, 1
      %p34 = por %p32, %p33
      %p35 = scmp.ne.s32.totalorder %s27, %s30
      %p36 = scmp.eq.s32.totalorder %s17, 0
      %p37 = por %p35, %p36
      %p38 = scmp.ne.s32.totalorder %s27, %s30
      %p39 = scmp.eq.s32.totalorder %s22, 1
      %p40 = por %p38, %p39
      %p41 = scmp.ne.s32.totalorder %s30, %s31
      %p42 = scmp.eq.s32.totalorder %s22, 0
      %p43 = por %p41, %p42
      %p44 = scmp.ne.s32.totalorder %s30, %s31
      %p45 = scmp.eq.s32.totalorder %s23, 1
      %p46 = por %p44, %p45
      %p48 = scmp.ne.s32.totalorder %s31, %s47
      %p49 = scmp.eq.s32.totalorder %s23, 0
      %p50 = por %p48, %p49
      %s52 = sadd.s32 %s51, 1
      %p55 = scmp.eq.s32.totalorder %s17, 1
      %p56 = scmp.ne.s32.totalorder %s51, %s53
      %p57 = scmp.eq.s32.totalorder %s17, 0
      %p58 = por %p56, %p57
      %p59 = scmp.ne.s32.totalorder %s51, %s53
      %p60 = scmp.eq.s32.totalorder %s22, 1
      %p61 = por %p59, %p60
      %p62 = scmp.ne.s32.totalorder %s53, %s54
      %p63 = scmp.eq.s32.totalorder %s22, 0
      %p64 = por %p62, %p63
      %p65 = scmp.ne.s32.totalorder %s53, %s54
      %p66 = scmp.eq.s32.totalorder %s23, 1
      %p67 = por %p65, %p66
      %p69 = scmp.ne.s32.totalorder %s54, %s68
      %p70 = scmp.eq.s32.totalorder %s23, 0
      %p71 = por %p69, %p70
      %s73 = sadd.s32 %s72, 1
      %p76 = scmp.eq.s32.totalorder %s17, 1
      %p77 = scmp.ne.s32.totalorder %s72, %s74
      %p78 = scmp.eq.s32.totalorder %s17, 0
      %p79 = por %p77, %p78
      %p80 = scmp.ne.s32.totalorder %s72, %s74
      %p81 = scmp.eq.s32.totalorder %s22, 1
      %p82 = por %p80, %p81
      %p83 = scmp.ne.s32.totalorder %s74, %s75
      %p84 = scmp.eq.s32.totalorder %s22, 0
      %p85 = por %p83, %p84
      %p86 = scmp.ne.s32.totalorder %s74, %s75
      %p87 = scmp.eq.s32.totalorder %s23, 1
      %p88 = por %p86, %p87
      %p90 = scmp.ne.s32.totalorder %s75, %s89
      %p91 = scmp.eq.s32.totalorder %s23, 0
      %p92 = por %p90, %p91
      %s94 = sadd.s32 %s93, 1
      %p97 = scmp.eq.s32.totalorder %s17, 1
      %p98 = scmp.ne.s32.totalorder %s93, %s95
      %p99 = scmp.eq.s32.totalorder %s17, 0
      %p100 = por %p98, %p99
      %p101 = scmp.ne.s32.totalorder %s93, %s95
      %p102 = scmp.eq.s32.totalorder %s22, 1
      %p103 = por %p101, %p102
      %p104 = scmp.ne.s32.totalorder %s95, %s96
      %p105 = scmp.eq.s32.totalorder %s22, 0
      %p106 = por %p104, %p105
      %p107 = scmp.ne.s32.totalorder %s95, %s96
      %p108 = scmp.eq.s32.totalorder %s23, 1
      %p109 = por %p107, %p108
      %p111 = scmp.ne.s32.totalorder %s96, %s110
      %p112 = scmp.eq.s32.totalorder %s23, 0
      %p113 = por %p111, %p112
      %s115 = sadd.s32 %s114, 1
      %p118 = scmp.eq.s32.totalorder %s17, 1
      %p119 = scmp.ne.s32.totalorder %s114, %s116
      %p120 = scmp.eq.s32.totalorder %s17, 0
      %p121 = por %p119, %p120
      %p122 = scmp.ne.s32.totalorder %s114, %s116
      %p123 = scmp.eq.s32.totalorder %s22, 1
      %p124 = por %p122, %p123
      %p125 = scmp.ne.s32.totalorder %s116, %s117
      %p126 = scmp.eq.s32.totalorder %s22, 0
      %p127 = por %p125, %p126
      %p128 = scmp.ne.s32.totalorder %s116, %s117
      %p129 = scmp.eq.s32.totalorder %s23, 1
      %p130 = por %p128, %p129
      %p132 = scmp.ne.s32.totalorder %s117, %s131
      %p133 = scmp.eq.s32.totalorder %s23, 0
      %p134 = por %p132, %p133
      %s136 = sadd.s32 %s135, 1
      %p139 = scmp.eq.s32.totalorder %s17, 1
      %p140 = scmp.ne.s32.totalorder %s135, %s137
      %p141 = scmp.eq.s32.totalorder %s17, 0
      %p142 = por %p140, %p141
      %p143 = scmp.ne.s32.totalorder %s135, %s137
      %p144 = scmp.eq.s32.totalorder %s22, 1
      %p145 = por %p143, %p144
      %p146 = scmp.ne.s32.totalorder %s137, %s138
      %p147 = scmp.eq.s32.totalorder %s22, 0
      %p148 = por %p146, %p147
      %p149 = scmp.ne.s32.totalorder %s137, %s138
      %p150 = scmp.eq.s32.totalorder %s23, 1
      %p151 = por %p149, %p150
      %p153 = scmp.ne.s32.totalorder %s138, %s152
      %p154 = scmp.eq.s32.totalorder %s23, 0
      %p155 = por %p153, %p154
      %s157 = sadd.s32 %s156, 1
      %p160 = scmp.eq.s32.totalorder %s17, 1
      %p161 = scmp.ne.s32.totalorder %s156, %s158
      %p162 = scmp.eq.s32.totalorder %s17, 0
      %p163 = por %p161, %p162
      %p164 = scmp.ne.s32.totalorder %s156, %s158
      %p165 = scmp.eq.s32.totalorder %s22, 1
      %p166 = por %p164, %p165
      %p167 = scmp.ne.s32.totalorder %s158, %s159
      %p168 = scmp.eq.s32.totalorder %s22, 0
      %p169 = por %p167, %p168
      %p170 = scmp.ne.s32.totalorder %s158, %s159
      %p171 = scmp.eq.s32.totalorder %s23, 1
      %p172 = por %p170, %p171
      %p174 = scmp.ne.s32.totalorder %s159, %s173
      %p175 = scmp.eq.s32.totalorder %s23, 0
      %p176 = por %p174, %p175
      %s177 = ssub.s32 %s17, %s24
      %p178 = scmp.eq.s32.totalorder %s177, 0
      %s180 = sadd.s32 %s179, 1
      %s181 = scalar_select %p178, %s179, %s180
      %p184 = pneg %p178
      %p185 = scmp.eq.s32.totalorder %s17, 1
      %p186 = por %p184, %p185
      %p187 = scmp.ne.s32.totalorder %s179, %s182
      %p188 = scmp.eq.s32.totalorder %s17, 0
      %p189 = por %p187, %p188
      %p190 = scmp.ne.s32.totalorder %s179, %s182
      %p191 = scmp.eq.s32.totalorder %s22, 1
      %p192 = por %p190, %p191
      %p193 = scmp.ne.s32.totalorder %s182, %s183
      %p194 = scmp.eq.s32.totalorder %s22, 0
      %p195 = por %p193, %p194
      %p196 = scmp.ne.s32.totalorder %s182, %s183
      %p197 = scmp.eq.s32.totalorder %s23, 1
      %p198 = por %p196, %p197
      %p200 = scmp.ne.s32.totalorder %s183, %s199
      %p201 = scmp.eq.s32.totalorder %s23, 0
      %p202 = por %p200, %p201
      %p203 = scmp.le.s32.totalorder 1, %s17
      %p204 = scmp.lt.s32.totalorder %s17, 3
      %p205 = pnand %p203, %p204
      %p206 = pneg %p205
      // Predicated region
      $region9: #{tpu_custom_call.1} parent=5 // pred_check
        _
      $region10: #{tpu_custom_call.1} parent=5 // pred_check_branch
        %208 = sbr.rel (%p205) target = $region12
      $region11: #{tpu_custom_call.1} parent=5 // pred_region
        %s209 = ssub.s32 %s17, 1
        // Predicated region
        $region13: #{tpu_custom_call.1} parent=11 // pred_check
          %p210 = pneg %p64
        $region14: #{tpu_custom_call.1} parent=11 // pred_check_branch
          %212 = sbr.rel (%p210) target = $region16
        $region15: #{tpu_custom_call.1} parent=11 // pred_region
          %s214 = ssub.s32 6144, 6144
          %215 = vsyncadd [#allocation5], %s214
          %s216 = sshll.u32 [#allocation4], 4
          %s217 = int_to_ptr.vmem [resolvable:$true] %s216
          %222 = dma.hbm_to_vmem [thread:$0]  %s1, 6144, %s217, [#allocation5], 128, 128, 8
        $region16: #{tpu_custom_call.1} parent=11 // pred_fallthru
          _
        // Predicated region
        $region17: #{tpu_custom_call.1} parent=11 // pred_check
          %p223 = pneg %p85
        $region18: #{tpu_custom_call.1} parent=11 // pred_check_branch
          %225 = sbr.rel (%p223) target = $region20
        $region19: #{tpu_custom_call.1} parent=11 // pred_region
          _
        $region20: #{tpu_custom_call.1} parent=11 // pred_fallthru
          _
        // Predicated region
        $region21: #{tpu_custom_call.1} parent=11 // pred_check
          %p226 = pneg %p106
        $region22: #{tpu_custom_call.1} parent=11 // pred_check_branch
          %228 = sbr.rel (%p226) target = $region24
        $region23: #{tpu_custom_call.1} parent=11 // pred_region
          %s230 = ssub.s32 4096, 4096
          %231 = vsyncadd [#allocation5], %s230
          %s232 = sshll.u32 [#allocation6], 4
          %s233 = int_to_ptr.vmem [resolvable:$true] %s232
          %238 = dma.hbm_to_vmem [thread:$0]  %s3, 4096, %s233, [#allocation5], 128, 128, 8
        $region24: #{tpu_custom_call.1} parent=11 // pred_fallthru
          _
        // Predicated region
        $region25: #{tpu_custom_call.1} parent=11 // pred_check
          %p239 = pneg %p127
        $region26: #{tpu_custom_call.1} parent=11 // pred_check_branch
          %241 = sbr.rel (%p239) target = $region28
        $region27: #{tpu_custom_call.1} parent=11 // pred_region
          _
        $region28: #{tpu_custom_call.1} parent=11 // pred_fallthru
          _
        // Predicated region
        $region29: #{tpu_custom_call.1} parent=11 // pred_check
          %p242 = pneg %p148
        $region30: #{tpu_custom_call.1} parent=11 // pred_check_branch
          %244 = sbr.rel (%p242) target = $region32
        $region31: #{tpu_custom_call.1} parent=11 // pred_region
          _
        $region32: #{tpu_custom_call.1} parent=11 // pred_fallthru
          _
        // Predicated region
        $region33: #{tpu_custom_call.1} parent=11 // pred_check
          %p245 = pneg %p169
        $region34: #{tpu_custom_call.1} parent=11 // pred_check_branch
          %247 = sbr.rel (%p245) target = $region36
        $region35: #{tpu_custom_call.1} parent=11 // pred_region
          _
        $region36: #{tpu_custom_call.1} parent=11 // pred_fallthru
          _
      $region12: #{tpu_custom_call.1} parent=5 // pred_fallthru
        _
      %p248 = scmp.lt.s32.totalorder %s17, 2
      // Predicated region
      $region37: #{tpu_custom_call.1} parent=5 // pred_check
        %p249 = pneg %p248
      $region38: #{tpu_custom_call.1} parent=5 // pred_check_branch
        %251 = sbr.rel (%p249) target = $region40
      $region39: #{tpu_custom_call.1} parent=5 // pred_region
        // Predicated region
        $region41: #{tpu_custom_call.1} parent=39 // pred_check
          %p252 = pneg %p37
        $region42: #{tpu_custom_call.1} parent=39 // pred_check_branch
          %254 = sbr.rel (%p252) target = $region44
        $region43: #{tpu_custom_call.1} parent=39 // pred_region
          %s255 = sand.u32 %s27, 1
          %s256 = scalar_lea.sflag [#allocation3], %s255
          %s257 = sand.u32 %s27, 1
          %s258 = smul.addr %s257, 336
          %s259 = scalar_lea.vmem [#allocation2], %s258
          %s260 = smul.u32 14, %s17
          %s261 = ssub.s32 25, %s260
          %p262 = scmp.lt.s32.totalorder %s261, 14
          %s263 = scalar_select %p262, %s261, 14
          %s264 = smul.u32 128, %s263
          %s265 = smul.u32 %s264, 3
          %s267 = ssub.s32 5376, %s265
          %268 = vsyncadd %s256, %s267
          %p269 = scmp.ne.s32.totalorder 0, %s265
          %s270 = smul.addr %s260, 3
          %s271 = smul.addr %s270, 128
          %s272 = scalar_lea.hbm %s0, %s271
          %s273 = smul.u32 24, %s263
          %s274 = sshll.u32 %s259, 4
          %s275 = int_to_ptr.vmem [resolvable:$true] %s274
          %s276 = sshll.u32 %s273, 4
          %280 = dma.hbm_to_vmem [thread:$0]  (%p269), %s272, %s276, %s275, %s256, 384, 384, 24
        $region44: #{tpu_custom_call.1} parent=39 // pred_fallthru
          _
      $region40: #{tpu_custom_call.1} parent=5 // pred_fallthru
        _
      %p281 = scmp.le.s32.totalorder 1, %s17
      %p282 = scmp.lt.s32.totalorder %s17, 3
      %p283 = pnand %p281, %p282
      %p284 = pneg %p283
      // Predicated region
      $region45: #{tpu_custom_call.1} parent=5 // pred_check
        _
      $region46: #{tpu_custom_call.1} parent=5 // pred_check_branch
        %286 = sbr.rel (%p283) target = $region48
      $region47: #{tpu_custom_call.1} parent=5 // pred_region
        %s287 = ssub.s32 %s17, 1
        %s288 = sand.u32 %s30, 1
        %s289 = scalar_lea.sflag [#allocation3], %s288
        %s290 = sand.u32 %s30, 1
        %s291 = smul.addr %s290, 336
        %s292 = scalar_lea.vmem [#allocation2], %s291
        // Predicated region
        $region49: #{tpu_custom_call.1} parent=47 // pred_check
          %p293 = pneg %p43
        $region50: #{tpu_custom_call.1} parent=47 // pred_check_branch
          %295 = sbr.rel (%p293) target = $region52
        $region51: #{tpu_custom_call.1} parent=47 // pred_region
          %296 = dma.done %s289, 5376
        $region52: #{tpu_custom_call.1} parent=47 // pred_fallthru
          _
        // Predicated region
        $region53: #{tpu_custom_call.1} parent=47 // pred_check
          %p297 = pneg %p64
        $region54: #{tpu_custom_call.1} parent=47 // pred_check_branch
          %299 = sbr.rel (%p297) target = $region56
        $region55: #{tpu_custom_call.1} parent=47 // pred_region
          %300 = dma.done [#allocation5], 6144
        $region56: #{tpu_custom_call.1} parent=47 // pred_fallthru
          _
        // Predicated region
        $region57: #{tpu_custom_call.1} parent=47 // pred_check
          %p301 = pneg %p106
        $region58: #{tpu_custom_call.1} parent=47 // pred_check_branch
          %303 = sbr.rel (%p301) target = $region60
        $region59: #{tpu_custom_call.1} parent=47 // pred_region
          %304 = dma.done [#allocation5], 4096
        $region60: #{tpu_custom_call.1} parent=47 // pred_fallthru
          _
        %s305 = sand.u32 %s30, 1
        %s306 = scalar_lea.sflag [#allocation3], %s305
        %s307 = sand.u32 %s30, 1
        %s308 = smul.addr %s307, 336
        %s309 = scalar_lea.vmem [#allocation2], %s308
        %p310 = pneg %p43
        %p311 = pneg %p40
        %p312 = pneg %p64
        %p313 = pneg %p61
        %p314 = pneg %p85
        %p315 = pneg %p82
        %p316 = pneg %p106
        %p317 = pneg %p103
        %p318 = pneg %p127
        %p319 = pneg %p124
        %p320 = pneg %p148
        %p321 = pneg %p145
        %p322 = pneg %p169
        %p323 = pneg %p166
        %p324 = pneg %p195
        %p325 = pneg %p192
        %s326 = sand.u32 %s182, 1
        %s327 = sand.u32 %s182, 1
        %s328 = smul.addr %s327, 112
        %s329 = scalar_lea.vmem [#allocation7], %s328
        %s330 = smul.u32 14, %s22
        %s331 = ssub.s32 25, %s330
        %p332 = scmp.lt.s32.totalorder %s331, 14
        %s333 = scalar_select %p332, %s331, 14
        %s334 = smul.u32 128, %s333
        %s335 = smul.u32 %s334, 3
        %s336 = smul.u32 14, %s22
        %s337 = ssub.s32 25, %s336
        %p338 = scmp.lt.s32.totalorder %s337, 14
        %s339 = scalar_select %p338, %s337, 14
        %s340 = smul.u32 128, %s339
        %v342 = vld [vmem:[%s292] sm:$0xff]
        %v343 = vld [vmem:[%s292 + $0x8] sm:$0xff]
        %v344 = vld [vmem:[%s292 + $0x10] sm:$0xff]
        %v345 = vld [vmem:[%s292 + $0x18] sm:$0xff]
        %v346 = vld [vmem:[%s292 + $0x20] sm:$0xff]
        %v347 = vld [vmem:[%s292 + $0x28] sm:$0xff]
        %v348 = vld [vmem:[%s292 + $0x30] sm:$0xff]
        %v349 = vld [vmem:[%s292 + $0x38] sm:$0xff]
        %v350 = vld [vmem:[%s292 + $0x40] sm:$0xff]
        %v351 = vld [vmem:[%s292 + $0x48] sm:$0xff]
        %v352 = vld [vmem:[%s292 + $0x50] sm:$0xff]
        %v353 = vld [vmem:[%s292 + $0x58] sm:$0xff]
        %v354 = vld [vmem:[%s292 + $0x60] sm:$0xff]
        %v355 = vld [vmem:[%s292 + $0x68] sm:$0xff]
        %v356 = vld [vmem:[%s292 + $0x70] sm:$0xff]
        %v357 = vld [vmem:[%s292 + $0x78] sm:$0xff]
        %v358 = vld [vmem:[%s292 + $0x80] sm:$0xff]
        %v359 = vld [vmem:[%s292 + $0x88] sm:$0xff]
        %v360 = vld [vmem:[%s292 + $0x90] sm:$0xff]
        %v361 = vld [vmem:[%s292 + $0x98] sm:$0xff]
        %v362 = vld [vmem:[%s292 + $0xa0] sm:$0xff]
        %v363 = vld [vmem:[%s292 + $0xa8] sm:$0xff]
        %v364 = vld [vmem:[%s292 + $0xb0] sm:$0xff]
        %v365 = vld [vmem:[%s292 + $0xb8] sm:$0xff]
        %v366 = vld [vmem:[%s292 + $0xc0] sm:$0xff]
        %v367 = vld [vmem:[%s292 + $0xc8] sm:$0xff]
        %v368 = vld [vmem:[%s292 + $0xd0] sm:$0xff]
        %v369 = vld [vmem:[%s292 + $0xd8] sm:$0xff]
        %v370 = vld [vmem:[%s292 + $0xe0] sm:$0xff]
        %v371 = vld [vmem:[%s292 + $0xe8] sm:$0xff]
        %v372 = vld [vmem:[%s292 + $0xf0] sm:$0xff]
        %v373 = vld [vmem:[%s292 + $0xf8] sm:$0xff]
        %v374 = vld [vmem:[%s292 + $0x100] sm:$0xff]
        %v375 = vld [vmem:[%s292 + $0x108] sm:$0xff]
        %v376 = vld [vmem:[%s292 + $0x110] sm:$0xff]
        %v377 = vld [vmem:[%s292 + $0x118] sm:$0xff]
        %v378 = vld [vmem:[%s292 + $0x120] sm:$0xff]
        %v379 = vld [vmem:[%s292 + $0x128] sm:$0xff]
        %v380 = vld [vmem:[%s292 + $0x130] sm:$0xff]
        %v381 = vld [vmem:[%s292 + $0x138] sm:$0xff]
        %v382 = vld [vmem:[%s292 + $0x140] sm:$0xff]
        %v383 = vld [vmem:[%s292 + $0x148] sm:$0xff]
        %v384 = vpack.c.bf16 %v345, %v342
        %v385 = vpack.c.bf16 %v346, %v343
        %v386 = vpack.c.bf16 %v347, %v344
        %v387 = vpack.c.bf16 %v351, %v348
        %v388 = vpack.c.bf16 %v352, %v349
        %v389 = vpack.c.bf16 %v353, %v350
        %v390 = vpack.c.bf16 %v357, %v354
        %v391 = vpack.c.bf16 %v358, %v355
        %v392 = vpack.c.bf16 %v359, %v356
        %v393 = vpack.c.bf16 %v363, %v360
        %v394 = vpack.c.bf16 %v364, %v361
        %v395 = vpack.c.bf16 %v365, %v362
        %v396 = vpack.c.bf16 %v369, %v366
        %v397 = vpack.c.bf16 %v370, %v367
        %v398 = vpack.c.bf16 %v371, %v368
        %v399 = vpack.c.bf16 %v375, %v372
        %v400 = vpack.c.bf16 %v376, %v373
        %v401 = vpack.c.bf16 %v377, %v374
        %v402 = vpack.c.bf16 %v381, %v378
        %v403 = vpack.c.bf16 %v382, %v379
        %v404 = vpack.c.bf16 %v383, %v380
        %v405 = vld [vmem:[#allocation4] sm:$0xff]
        %v406 = vld [vmem:[#allocation4 + $0x8] sm:$0xff]
        %v407 = vld [vmem:[#allocation4 + $0x10] sm:$0xff]
        %v408 = vld [vmem:[#allocation4 + $0x18] sm:$0xff]
        %v409 = vld [vmem:[#allocation4 + $0x20] sm:$0xff]
        %v410 = vld [vmem:[#allocation4 + $0x28] sm:$0xff]
        %v411 = vld [vmem:[#allocation4 + $0x30] sm:$0xff]
        %v412 = vld [vmem:[#allocation4 + $0x38] sm:$0xff]
        %v413 = vld [vmem:[#allocation4 + $0x40] sm:$0xff]
        %v414 = vld [vmem:[#allocation4 + $0x48] sm:$0xff]
        %v415 = vld [vmem:[#allocation4 + $0x50] sm:$0xff]
        %v416 = vld [vmem:[#allocation4 + $0x58] sm:$0xff]
        %v417 = vld [vmem:[#allocation4 + $0x60] sm:$0xff]
        %v418 = vld [vmem:[#allocation4 + $0x68] sm:$0xff]
        %v419 = vld [vmem:[#allocation4 + $0x70] sm:$0xff]
        %v420 = vld [vmem:[#allocation4 + $0x78] sm:$0xff]
        %v421 = vld [vmem:[#allocation4 + $0x80] sm:$0xff]
        %v422 = vld [vmem:[#allocation4 + $0x88] sm:$0xff]
        %v423 = vld [vmem:[#allocation4 + $0x90] sm:$0xff]
        %v424 = vld [vmem:[#allocation4 + $0x98] sm:$0xff]
        %v425 = vld [vmem:[#allocation4 + $0xa0] sm:$0xff]
        %v426 = vld [vmem:[#allocation4 + $0xa8] sm:$0xff]
        %v427 = vld [vmem:[#allocation4 + $0xb0] sm:$0xff]
        %v428 = vld [vmem:[#allocation4 + $0xb8] sm:$0xff]
        %v429 = vld [vmem:[#allocation4 + $0xc0] sm:$0xff]
        %v430 = vld [vmem:[#allocation4 + $0xc8] sm:$0xff]
        %v431 = vld [vmem:[#allocation4 + $0xd0] sm:$0xff]
        %v432 = vld [vmem:[#allocation4 + $0xd8] sm:$0xff]
        %v433 = vld [vmem:[#allocation4 + $0xe0] sm:$0xff]
        %v434 = vld [vmem:[#allocation4 + $0xe8] sm:$0xff]
        %v435 = vld [vmem:[#allocation4 + $0xf0] sm:$0xff]
        %v436 = vld [vmem:[#allocation4 + $0xf8] sm:$0xff]
        %v437 = vld [vmem:[#allocation4 + $0x100] sm:$0xff]
        %v438 = vld [vmem:[#allocation4 + $0x108] sm:$0xff]
        %v439 = vld [vmem:[#allocation4 + $0x110] sm:$0xff]
        %v440 = vld [vmem:[#allocation4 + $0x118] sm:$0xff]
        %v441 = vld [vmem:[#allocation4 + $0x120] sm:$0xff]
        %v442 = vld [vmem:[#allocation4 + $0x128] sm:$0xff]
        %v443 = vld [vmem:[#allocation4 + $0x130] sm:$0xff]
        %v444 = vld [vmem:[#allocation4 + $0x138] sm:$0xff]
        %v445 = vld [vmem:[#allocation4 + $0x140] sm:$0xff]
        %v446 = vld [vmem:[#allocation4 + $0x148] sm:$0xff]
        %v447 = vld [vmem:[#allocation4 + $0x150] sm:$0xff]
        %v448 = vld [vmem:[#allocation4 + $0x158] sm:$0xff]
        %v449 = vld [vmem:[#allocation4 + $0x160] sm:$0xff]
        %v450 = vld [vmem:[#allocation4 + $0x168] sm:$0xff]
        %v451 = vld [vmem:[#allocation4 + $0x170] sm:$0xff]
        %v452 = vld [vmem:[#allocation4 + $0x178] sm:$0xff]
        %v453 = vld [vmem:[%s2] sm:$0x3]
        %v455 = vlaneseq
        %v456 = vshrl.u32 %v455, 7
        %v457 = vsub.s32 0, %v456
        %v458 = vrot.slane %v453, %v457
        %v459 = vlaneseq
        %v460 = vshrl.u32 %v459, 7
        %v461 = vsub.s32 1, %v460
        %v462 = vrot.slane %v453, %v461
        %v513 = vunpack.c.l.b16 %v405
        %v514 = vunpack.c.h.b16 %v405
        %v515 = vunpack.c.l.b16 %v406
        %v516 = vunpack.c.h.b16 %v406
        %v517 = vunpack.c.l.b16 %v407
        %v518 = vunpack.c.h.b16 %v407
        %v519 = vunpack.c.l.b16 %v408
        %v520 = vunpack.c.h.b16 %v408
        %v521 = vunpack.c.l.b16 %v409
        %v522 = vunpack.c.h.b16 %v409
        %v523 = vunpack.c.l.b16 %v410
        %v524 = vunpack.c.h.b16 %v410
        %v525 = vunpack.c.l.b16 %v411
        %v526 = vunpack.c.h.b16 %v411
        %v527 = vunpack.c.l.b16 %v412
        %v528 = vunpack.c.h.b16 %v412
        %v529 = vunpack.c.l.b16 %v413
        %v530 = vunpack.c.h.b16 %v413
        %v531 = vunpack.c.l.b16 %v414
        %v532 = vunpack.c.h.b16 %v414
        %v533 = vunpack.c.l.b16 %v415
        %v534 = vunpack.c.h.b16 %v415
        %v535 = vunpack.c.l.b16 %v416
        %v536 = vunpack.c.h.b16 %v416
        %v537 = vunpack.c.l.b16 %v417
        %v538 = vunpack.c.h.b16 %v417
        %v539 = vunpack.c.l.b16 %v418
        %v540 = vunpack.c.h.b16 %v418
        %v541 = vunpack.c.l.b16 %v419
        %v542 = vunpack.c.h.b16 %v419
        %v543 = vunpack.c.l.b16 %v420
        %v544 = vunpack.c.h.b16 %v420
        %v545 = vunpack.c.l.b16 %v421
        %v546 = vunpack.c.h.b16 %v421
        %v547 = vunpack.c.l.b16 %v422
        %v548 = vunpack.c.h.b16 %v422
        %v549 = vunpack.c.l.b16 %v423
        %v550 = vunpack.c.h.b16 %v423
        %v551 = vunpack.c.l.b16 %v424
        %v552 = vunpack.c.h.b16 %v424
        %v553 = vunpack.c.l.b16 %v425
        %v554 = vunpack.c.h.b16 %v425
        %v555 = vunpack.c.l.b16 %v426
        %v556 = vunpack.c.h.b16 %v426
        %v557 = vunpack.c.l.b16 %v427
        %v558 = vunpack.c.h.b16 %v427
        %v559 = vunpack.c.l.b16 %v428
        %v560 = vunpack.c.h.b16 %v428
        %v561 = vunpack.c.l.b16 %v429
        %v562 = vunpack.c.h.b16 %v429
        %v563 = vunpack.c.l.b16 %v430
        %v564 = vunpack.c.h.b16 %v430
        %v565 = vunpack.c.l.b16 %v431
        %v566 = vunpack.c.h.b16 %v431
        %v567 = vunpack.c.l.b16 %v432
        %v568 = vunpack.c.h.b16 %v432
        %v569 = vunpack.c.l.b16 %v433
        %v570 = vunpack.c.h.b16 %v433
        %v571 = vunpack.c.l.b16 %v434
        %v572 = vunpack.c.h.b16 %v434
        %v573 = vunpack.c.l.b16 %v435
        %v574 = vunpack.c.h.b16 %v435
        %v575 = vunpack.c.l.b16 %v436
        %v576 = vunpack.c.h.b16 %v436
        %v577 = vunpack.c.l.b16 %v437
        %v578 = vunpack.c.h.b16 %v437
        %v579 = vunpack.c.l.b16 %v438
        %v580 = vunpack.c.h.b16 %v438
        %v581 = vunpack.c.l.b16 %v439
        %v582 = vunpack.c.h.b16 %v439
        %v583 = vunpack.c.l.b16 %v440
        %v584 = vunpack.c.h.b16 %v440
        %v585 = vunpack.c.l.b16 %v441
        %v586 = vunpack.c.h.b16 %v441
        %v587 = vunpack.c.l.b16 %v442
        %v588 = vunpack.c.h.b16 %v442
        %v589 = vunpack.c.l.b16 %v443
        %v590 = vunpack.c.h.b16 %v443
        %v591 = vunpack.c.l.b16 %v444
        %v592 = vunpack.c.h.b16 %v444
        %v593 = vunpack.c.l.b16 %v445
        %v594 = vunpack.c.h.b16 %v445
        %v595 = vunpack.c.l.b16 %v446
        %v596 = vunpack.c.h.b16 %v446
        %v597 = vunpack.c.l.b16 %v447
        %v598 = vunpack.c.h.b16 %v447
        %v599 = vunpack.c.l.b16 %v448
        %v600 = vunpack.c.h.b16 %v448
        %v601 = vunpack.c.l.b16 %v449
        %v602 = vunpack.c.h.b16 %v449
        %v603 = vunpack.c.l.b16 %v450
        %v604 = vunpack.c.h.b16 %v450
        %v605 = vunpack.c.l.b16 %v451
        %v606 = vunpack.c.h.b16 %v451
        %v607 = vunpack.c.l.b16 %v452
        %v608 = vunpack.c.h.b16 %v452
        %v609 = vpack.c.b16 %v515, %v513
        %v610 = vpack.c.b16 %v516, %v514
        %v611 = vpack.c.b16 %v519, %v517
        %v612 = vpack.c.b16 %v520, %v518
        %v613 = vpack.c.b16 %v523, %v521
        %v614 = vpack.c.b16 %v524, %v522
        %v615 = vpack.c.b16 %v527, %v525
        %v616 = vpack.c.b16 %v528, %v526
        %v617 = vpack.c.b16 %v531, %v529
        %v618 = vpack.c.b16 %v532, %v530
        %v619 = vpack.c.b16 %v535, %v533
        %v620 = vpack.c.b16 %v536, %v534
        %v621 = vpack.c.b16 %v539, %v537
        %v622 = vpack.c.b16 %v540, %v538
        %v623 = vpack.c.b16 %v543, %v541
        %v624 = vpack.c.b16 %v544, %v542
        %v625 = vpack.c.b16 %v547, %v545
        %v626 = vpack.c.b16 %v548, %v546
        %v627 = vpack.c.b16 %v551, %v549
        %v628 = vpack.c.b16 %v552, %v550
        %v629 = vpack.c.b16 %v555, %v553
        %v630 = vpack.c.b16 %v556, %v554
        %v631 = vpack.c.b16 %v559, %v557
        %v632 = vpack.c.b16 %v560, %v558
        %v633 = vpack.c.b16 %v563, %v561
        %v634 = vpack.c.b16 %v564, %v562
        %v635 = vpack.c.b16 %v567, %v565
        %v636 = vpack.c.b16 %v568, %v566
        %v637 = vpack.c.b16 %v571, %v569
        %v638 = vpack.c.b16 %v572, %v570
        %v639 = vpack.c.b16 %v575, %v573
        %v640 = vpack.c.b16 %v576, %v574
        %v641 = vpack.c.b16 %v579, %v577
        %v642 = vpack.c.b16 %v580, %v578
        %v643 = vpack.c.b16 %v583, %v581
        %v644 = vpack.c.b16 %v584, %v582
        %v645 = vpack.c.b16 %v587, %v585
        %v646 = vpack.c.b16 %v588, %v586
        %v647 = vpack.c.b16 %v591, %v589
        %v648 = vpack.c.b16 %v592, %v590
        %v649 = vpack.c.b16 %v595, %v593
        %v650 = vpack.c.b16 %v596, %v594
        %v651 = vpack.c.b16 %v599, %v597
        %v652 = vpack.c.b16 %v600, %v598
        %v653 = vpack.c.b16 %v603, %v601
        %v654 = vpack.c.b16 %v604, %v602
        %v655 = vpack.c.b16 %v607, %v605
        %v656 = vpack.c.b16 %v608, %v606
        %705 = vmatprep.subr.bf16.mxu0 %v610
        %706 = vmatpush1.bf16.msra.mxu0 %v609
        %707 = vmatprep.subr.bf16.mxu0 %v612
        %708 = vmatpush1.bf16.msra.mxu0 %v611
        %709 = vmatprep.subr.bf16.mxu0 %v614
        %710 = vmatpush1.bf16.msra.mxu0 %v613
        %711 = vmatprep.subr.bf16.mxu0 %v616
        %712 = vmatpush1.bf16.msra.mxu0 %v615
        %713 = vmatprep.subr.bf16.mxu0 %v618
        %714 = vmatpush1.bf16.msra.mxu0 %v617
        %715 = vmatprep.subr.bf16.mxu0 %v620
        %716 = vmatpush1.bf16.msra.mxu0 %v619
        %717 = vmatprep.subr.bf16.mxu0 %v622
        %718 = vmatpush1.bf16.msra.mxu0 %v621
        %719 = vmatprep.subr.bf16.mxu0 %v624
        %720 = vmatpush1.bf16.msra.mxu0 %v623
        %721 = vmatprep.subr.bf16.mxu0 %v626
        %722 = vmatpush1.bf16.msra.mxu0 %v625
        %723 = vmatprep.subr.bf16.mxu0 %v628
        %724 = vmatpush1.bf16.msra.mxu0 %v627
        %725 = vmatprep.subr.bf16.mxu0 %v630
        %726 = vmatpush1.bf16.msra.mxu0 %v629
        %727 = vmatprep.subr.bf16.mxu0 %v632
        %728 = vmatpush1.bf16.msra.mxu0 %v631
        %729 = vmatprep.subr.bf16.mxu0 %v634
        %730 = vmatpush1.bf16.msra.mxu0 %v633
        %731 = vmatprep.subr.bf16.mxu0 %v636
        %732 = vmatpush1.bf16.msra.mxu0 %v635
        %733 = vmatprep.subr.bf16.mxu0 %v638
        %734 = vmatpush1.bf16.msra.mxu0 %v637
        %735 = vmatprep.subr.bf16.mxu0 %v640
        %736 = vmatpush1.bf16.msra.mxu0 %v639
        %737 = vmatprep.mubr.bf16.mxu0 %v385
        %738 = vmatmul.mubr.bf16.gmra.mrb[0].mxu0 %v384
        %v739 = vpop.f32.mrb[0].mxu0
        %v740 = vadd.f32 %v458, %v739
        %v741 = vpop.f32.mrb[0].mxu0
        %v742 = vadd.f32 %v462, %v741
        %v743 = vpop.f32.mrb[0].mxu0
        %v744 = vadd.f32 %v458, %v743
        %v745 = vpop.f32.mrb[0].mxu0
        %v746 = vadd.f32 %v462, %v745
        %747 = vmatprep.mubr.bf16.mxu0 %v388
        %748 = vmatmul.mubr.bf16.gmra.mrb[0].mxu0 %v387
        %v749 = vpop.f32.mrb[0].mxu0
        %v750 = vadd.f32 %v458, %v749
        %v751 = vpop.f32.mrb[0].mxu0
        %v752 = vadd.f32 %v462, %v751
        %v753 = vpop.f32.mrb[0].mxu0
        %v754 = vadd.f32 %v458, %v753
        %v755 = vpop.f32.mrb[0].mxu0
        %v756 = vadd.f32 %v462, %v755
        %757 = vmatprep.mubr.bf16.mxu0 %v391
        %758 = vmatmul.mubr.bf16.gmra.mrb[0].mxu0 %v390
        %v759 = vpop.f32.mrb[0].mxu0
        %v760 = vadd.f32 %v458, %v759
        %v761 = vpop.f32.mrb[0].mxu0
        %v762 = vadd.f32 %v462, %v761
        %v763 = vpop.f32.mrb[0].mxu0
        %v764 = vadd.f32 %v458, %v763
        %v765 = vpop.f32.mrb[0].mxu0
        %v766 = vadd.f32 %v462, %v765
        %767 = vmatprep.mubr.bf16.mxu0 %v394
        %768 = vmatmul.mubr.bf16.gmra.mrb[0].mxu0 %v393
        %v769 = vpop.f32.mrb[0].mxu0
        %v770 = vadd.f32 %v458, %v769
        %v771 = vpop.f32.mrb[0].mxu0
        %v772 = vadd.f32 %v462, %v771
        %v773 = vpop.f32.mrb[0].mxu0
        %v774 = vadd.f32 %v458, %v773
        %v775 = vpop.f32.mrb[0].mxu0
        %v776 = vadd.f32 %v462, %v775
        %777 = vmatprep.mubr.bf16.mxu0 %v397
        %778 = vmatmul.mubr.bf16.gmra.mrb[0].mxu0 %v396
        %v779 = vpop.f32.mrb[0].mxu0
        %v780 = vadd.f32 %v458, %v779
        %v781 = vpop.f32.mrb[0].mxu0
        %v782 = vadd.f32 %v462, %v781
        %v783 = vpop.f32.mrb[0].mxu0
        %v784 = vadd.f32 %v458, %v783
        %v785 = vpop.f32.mrb[0].mxu0
        %v786 = vadd.f32 %v462, %v785
        %787 = vmatprep.mubr.bf16.mxu0 %v400
        %788 = vmatmul.mubr.bf16.gmra.mrb[0].mxu0 %v399
        %v789 = vpop.f32.mrb[0].mxu0
        %v790 = vadd.f32 %v458, %v789
        %v791 = vpop.f32.mrb[0].mxu0
        %v792 = vadd.f32 %v462, %v791
        %v793 = vpop.f32.mrb[0].mxu0
        %v794 = vadd.f32 %v458, %v793
        %v795 = vpop.f32.mrb[0].mxu0
        %v796 = vadd.f32 %v462, %v795
        %797 = vmatprep.mubr.bf16.mxu0 %v403
        %798 = vmatmul.mubr.bf16.gmra.mrb[0].mxu0 %v402
        %v799 = vpop.f32.mrb[0].mxu0
        %v800 = vadd.f32 %v458, %v799
        %v801 = vpop.f32.mrb[0].mxu0
        %v802 = vadd.f32 %v462, %v801
        %v803 = vpop.f32.mrb[0].mxu0
        %v804 = vadd.f32 %v458, %v803
        %v805 = vpop.f32.mrb[0].mxu0
        %v806 = vadd.f32 %v462, %v805
        %807 = vdwg.mxu0
        %808 = vmatprep.subr.bf16.mxu0 %v642
        %809 = vmatpush1.bf16.msra.mxu0 %v641
        %810 = vmatprep.subr.bf16.mxu0 %v644
        %811 = vmatpush1.bf16.msra.mxu0 %v643
        %812 = vmatprep.subr.bf16.mxu0 %v646
        %813 = vmatpush1.bf16.msra.mxu0 %v645
        %814 = vmatprep.subr.bf16.mxu0 %v648
        %815 = vmatpush1.bf16.msra.mxu0 %v647
        %816 = vmatprep.subr.bf16.mxu0 %v650
        %817 = vmatpush1.bf16.msra.mxu0 %v649
        %818 = vmatprep.subr.bf16.mxu0 %v652
        %819 = vmatpush1.bf16.msra.mxu0 %v651
        %820 = vmatprep.subr.bf16.mxu0 %v654
        %821 = vmatpush1.bf16.msra.mxu0 %v653
        %822 = vmatprep.subr.bf16.mxu0 %v656
        %823 = vmatpush1.bf16.msra.mxu0 %v655
        %824 = vmatprep.subr.bf16.mxu0 0
        %825 = vmatpush1.bf16.msra.mxu0 0
        %826 = vmatprep.subr.bf16.mxu0 0
        %827 = vmatpush1.bf16.msra.mxu0 0
        %828 = vmatprep.subr.bf16.mxu0 0
        %829 = vmatpush1.bf16.msra.mxu0 0
        %830 = vmatprep.subr.bf16.mxu0 0
        %831 = vmatpush1.bf16.msra.mxu0 0
        %832 = vmatprep.subr.bf16.mxu0 0
        %833 = vmatpush1.bf16.msra.mxu0 0
        %834 = vmatprep.subr.bf16.mxu0 0
        %835 = vmatpush1.bf16.msra.mxu0 0
        %836 = vmatprep.subr.bf16.mxu0 0
        %837 = vmatpush1.bf16.msra.mxu0 0
        %838 = vmatprep.subr.bf16.mxu0 0
        %839 = vmatpush1.bf16.msra.mxu0 0
        %840 = vmatprep.mubr.bf16.mxu0 0
        %841 = vmatmul.mubr.bf16.gmra.mrb[0].mxu0 %v386
        %v842 = vpop.f32.mrb[0].mxu0
        %v843 = vadd.f32 %v740, %v842
        %v844 = vpop.f32.mrb[0].mxu0
        %v845 = vadd.f32 %v742, %v844
        %v846 = vpop.f32.mrb[0].mxu0
        %v847 = vadd.f32 %v744, %v846
        %v848 = vpop.f32.mrb[0].mxu0
        %v849 = vadd.f32 %v746, %v848
        %850 = vmatprep.mubr.bf16.mxu0 0
        %851 = vmatmul.mubr.bf16.gmra.mrb[0].mxu0 %v389
        %v852 = vpop.f32.mrb[0].mxu0
        %v853 = vadd.f32 %v750, %v852
        %v854 = vpop.f32.mrb[0].mxu0
        %v855 = vadd.f32 %v752, %v854
        %v856 = vpop.f32.mrb[0].mxu0
        %v857 = vadd.f32 %v754, %v856
        %v858 = vpop.f32.mrb[0].mxu0
        %v859 = vadd.f32 %v756, %v858
        %860 = vmatprep.mubr.bf16.mxu0 0
        %861 = vmatmul.mubr.bf16.gmra.mrb[0].mxu0 %v392
        %v862 = vpop.f32.mrb[0].mxu0
        %v863 = vadd.f32 %v760, %v862
        %v864 = vpop.f32.mrb[0].mxu0
        %v865 = vadd.f32 %v762, %v864
        %v866 = vpop.f32.mrb[0].mxu0
        %v867 = vadd.f32 %v764, %v866
        %v868 = vpop.f32.mrb[0].mxu0
        %v869 = vadd.f32 %v766, %v868
        %870 = vmatprep.mubr.bf16.mxu0 0
        %871 = vmatmul.mubr.bf16.gmra.mrb[0].mxu0 %v395
        %v872 = vpop.f32.mrb[0].mxu0
        %v873 = vadd.f32 %v770, %v872
        %v874 = vpop.f32.mrb[0].mxu0
        %v875 = vadd.f32 %v772, %v874
        %v876 = vpop.f32.mrb[0].mxu0
        %v877 = vadd.f32 %v774, %v876
        %v878 = vpop.f32.mrb[0].mxu0
        %v879 = vadd.f32 %v776, %v878
        %880 = vmatprep.mubr.bf16.mxu0 0
        %881 = vmatmul.mubr.bf16.gmra.mrb[0].mxu0 %v398
        %v882 = vpop.f32.mrb[0].mxu0
        %v883 = vadd.f32 %v780, %v882
        %v884 = vpop.f32.mrb[0].mxu0
        %v885 = vadd.f32 %v782, %v884
        %v886 = vpop.f32.mrb[0].mxu0
        %v887 = vadd.f32 %v784, %v886
        %v888 = vpop.f32.mrb[0].mxu0
        %v889 = vadd.f32 %v786, %v888
        %890 = vmatprep.mubr.bf16.mxu0 0
        %891 = vmatmul.mubr.bf16.gmra.mrb[0].mxu0 %v401
        %v892 = vpop.f32.mrb[0].mxu0
        %v893 = vadd.f32 %v790, %v892
        %v894 = vpop.f32.mrb[0].mxu0
        %v895 = vadd.f32 %v792, %v894
        %v896 = vpop.f32.mrb[0].mxu0
        %v897 = vadd.f32 %v794, %v896
        %v898 = vpop.f32.mrb[0].mxu0
        %v899 = vadd.f32 %v796, %v898
        %900 = vmatprep.mubr.bf16.mxu0 0
        %901 = vmatmul.mubr.bf16.gmra.mrb[0].mxu0 %v404
        %v902 = vpop.f32.mrb[0].mxu0
        %v903 = vadd.f32 %v800, %v902
        %v904 = vpop.f32.mrb[0].mxu0
        %v905 = vadd.f32 %v802, %v904
        %v906 = vpop.f32.mrb[0].mxu0
        %v907 = vadd.f32 %v804, %v906
        %v908 = vpop.f32.mrb[0].mxu0
        %v909 = vadd.f32 %v806, %v908
        %910 = vdwg.mxu0
        %v911 = vmax.f32 %v843, 0.0
        %v912 = vmax.f32 %v845, 0.0
        %v913 = vmax.f32 %v847, 0.0
        %v914 = vmax.f32 %v849, 0.0
        %v915 = vmax.f32 %v853, 0.0
        %v916 = vmax.f32 %v855, 0.0
        %v917 = vmax.f32 %v857, 0.0
        %v918 = vmax.f32 %v859, 0.0
        %v919 = vmax.f32 %v863, 0.0
        %v920 = vmax.f32 %v865, 0.0
        %v921 = vmax.f32 %v867, 0.0
        %v922 = vmax.f32 %v869, 0.0
        %v923 = vmax.f32 %v873, 0.0
        %v924 = vmax.f32 %v875, 0.0
        %v925 = vmax.f32 %v877, 0.0
        %v926 = vmax.f32 %v879, 0.0
        %v927 = vmax.f32 %v883, 0.0
        %v928 = vmax.f32 %v885, 0.0
        %v929 = vmax.f32 %v887, 0.0
        %v930 = vmax.f32 %v889, 0.0
        %v931 = vmax.f32 %v893, 0.0
        %v932 = vmax.f32 %v895, 0.0
        %v933 = vmax.f32 %v897, 0.0
        %v934 = vmax.f32 %v899, 0.0
        %v935 = vmax.f32 %v903, 0.0
        %v936 = vmax.f32 %v905, 0.0
        %v937 = vmax.f32 %v907, 0.0
        %v938 = vmax.f32 %v909, 0.0
        %v939 = vpack.c.bf16 %v913, %v911
        %v940 = vpack.c.bf16 %v914, %v912
        %v941 = vpack.c.bf16 %v917, %v915
        %v942 = vpack.c.bf16 %v918, %v916
        %v943 = vpack.c.bf16 %v921, %v919
        %v944 = vpack.c.bf16 %v922, %v920
        %v945 = vpack.c.bf16 %v925, %v923
        %v946 = vpack.c.bf16 %v926, %v924
        %v947 = vpack.c.bf16 %v929, %v927
        %v948 = vpack.c.bf16 %v930, %v928
        %v949 = vpack.c.bf16 %v933, %v931
        %v950 = vpack.c.bf16 %v934, %v932
        %v951 = vpack.c.bf16 %v937, %v935
        %v952 = vpack.c.bf16 %v938, %v936
        %v953 = vld [vmem:[#allocation6] sm:$0xff]
        %v954 = vld [vmem:[#allocation6 + $0x8] sm:$0xff]
        %v955 = vld [vmem:[#allocation6 + $0x10] sm:$0xff]
        %v956 = vld [vmem:[#allocation6 + $0x18] sm:$0xff]
        %v957 = vld [vmem:[#allocation6 + $0x20] sm:$0xff]
        %v958 = vld [vmem:[#allocation6 + $0x28] sm:$0xff]
        %v959 = vld [vmem:[#allocation6 + $0x30] sm:$0xff]
        %v960 = vld [vmem:[#allocation6 + $0x38] sm:$0xff]
        %v961 = vld [vmem:[#allocation6 + $0x40] sm:$0xff]
        %v962 = vld [vmem:[#allocation6 + $0x48] sm:$0xff]
        %v963 = vld [vmem:[#allocation6 + $0x50] sm:$0xff]
        %v964 = vld [vmem:[#allocation6 + $0x58] sm:$0xff]
        %v965 = vld [vmem:[#allocation6 + $0x60] sm:$0xff]
        %v966 = vld [vmem:[#allocation6 + $0x68] sm:$0xff]
        %v967 = vld [vmem:[#allocation6 + $0x70] sm:$0xff]
        %v968 = vld [vmem:[#allocation6 + $0x78] sm:$0xff]
        %v969 = vld [vmem:[#allocation6 + $0x80] sm:$0xff]
        %v970 = vld [vmem:[#allocation6 + $0x88] sm:$0xff]
        %v971 = vld [vmem:[#allocation6 + $0x90] sm:$0xff]
        %v972 = vld [vmem:[#allocation6 + $0x98] sm:$0xff]
        %v973 = vld [vmem:[#allocation6 + $0xa0] sm:$0xff]
        %v974 = vld [vmem:[#allocation6 + $0xa8] sm:$0xff]
        %v975 = vld [vmem:[#allocation6 + $0xb0] sm:$0xff]
        %v976 = vld [vmem:[#allocation6 + $0xb8] sm:$0xff]
        %v977 = vld [vmem:[#allocation6 + $0xc0] sm:$0xff]
        %v978 = vld [vmem:[#allocation6 + $0xc8] sm:$0xff]
        %v979 = vld [vmem:[#allocation6 + $0xd0] sm:$0xff]
        %v980 = vld [vmem:[#allocation6 + $0xd8] sm:$0xff]
        %v981 = vld [vmem:[#allocation6 + $0xe0] sm:$0xff]
        %v982 = vld [vmem:[#allocation6 + $0xe8] sm:$0xff]
        %v983 = vld [vmem:[#allocation6 + $0xf0] sm:$0xff]
        %v984 = vld [vmem:[#allocation6 + $0xf8] sm:$0xff]
        %v985 = vld [vmem:[%s4] sm:$0x3]
        %v987 = vlaneseq
        %v988 = vshrl.u32 %v987, 7
        %v989 = vsub.s32 0, %v988
        %v990 = vrot.slane %v985, %v989
        %v991 = vlaneseq
        %v992 = vshrl.u32 %v991, 7
        %v993 = vsub.s32 1, %v992
        %v994 = vrot.slane %v985, %v993
        %v1029 = vunpack.c.l.b16 %v953
        %v1030 = vunpack.c.h.b16 %v953
        %v1031 = vunpack.c.l.b16 %v954
        %v1032 = vunpack.c.h.b16 %v954
        %v1033 = vunpack.c.l.b16 %v955
        %v1034 = vunpack.c.h.b16 %v955
        %v1035 = vunpack.c.l.b16 %v956
        %v1036 = vunpack.c.h.b16 %v956
        %v1037 = vunpack.c.l.b16 %v957
        %v1038 = vunpack.c.h.b16 %v957
        %v1039 = vunpack.c.l.b16 %v958
        %v1040 = vunpack.c.h.b16 %v958
        %v1041 = vunpack.c.l.b16 %v959
        %v1042 = vunpack.c.h.b16 %v959
        %v1043 = vunpack.c.l.b16 %v960
        %v1044 = vunpack.c.h.b16 %v960
        %v1045 = vunpack.c.l.b16 %v961
        %v1046 = vunpack.c.h.b16 %v961
        %v1047 = vunpack.c.l.b16 %v962
        %v1048 = vunpack.c.h.b16 %v962
        %v1049 = vunpack.c.l.b16 %v963
        %v1050 = vunpack.c.h.b16 %v963
        %v1051 = vunpack.c.l.b16 %v964
        %v1052 = vunpack.c.h.b16 %v964
        %v1053 = vunpack.c.l.b16 %v965
        %v1054 = vunpack.c.h.b16 %v965
        %v1055 = vunpack.c.l.b16 %v966
        %v1056 = vunpack.c.h.b16 %v966
        %v1057 = vunpack.c.l.b16 %v967
        %v1058 = vunpack.c.h.b16 %v967
        %v1059 = vunpack.c.l.b16 %v968
        %v1060 = vunpack.c.h.b16 %v968
        %v1061 = vunpack.c.l.b16 %v969
        %v1062 = vunpack.c.h.b16 %v969
        %v1063 = vunpack.c.l.b16 %v970
        %v1064 = vunpack.c.h.b16 %v970
        %v1065 = vunpack.c.l.b16 %v971
        %v1066 = vunpack.c.h.b16 %v971
        %v1067 = vunpack.c.l.b16 %v972
        %v1068 = vunpack.c.h.b16 %v972
        %v1069 = vunpack.c.l.b16 %v973
        %v1070 = vunpack.c.h.b16 %v973
        %v1071 = vunpack.c.l.b16 %v974
        %v1072 = vunpack.c.h.b16 %v974
        %v1073 = vunpack.c.l.b16 %v975
        %v1074 = vunpack.c.h.b16 %v975
        %v1075 = vunpack.c.l.b16 %v976
        %v1076 = vunpack.c.h.b16 %v976
        %v1077 = vunpack.c.l.b16 %v977
        %v1078 = vunpack.c.h.b16 %v977
        %v1079 = vunpack.c.l.b16 %v978
        %v1080 = vunpack.c.h.b16 %v978
        %v1081 = vunpack.c.l.b16 %v979
        %v1082 = vunpack.c.h.b16 %v979
        %v1083 = vunpack.c.l.b16 %v980
        %v1084 = vunpack.c.h.b16 %v980
        %v1085 = vunpack.c.l.b16 %v981
        %v1086 = vunpack.c.h.b16 %v981
        %v1087 = vunpack.c.l.b16 %v982
        %v1088 = vunpack.c.h.b16 %v982
        %v1089 = vunpack.c.l.b16 %v983
        %v1090 = vunpack.c.h.b16 %v983
        %v1091 = vunpack.c.l.b16 %v984
        %v1092 = vunpack.c.h.b16 %v984
        %v1093 = vpack.c.b16 %v1031, %v1029
        %v1094 = vpack.c.b16 %v1032, %v1030
        %v1095 = vpack.c.b16 %v1035, %v1033
        %v1096 = vpack.c.b16 %v1036, %v1034
        %v1097 = vpack.c.b16 %v1039, %v1037
        %v1098 = vpack.c.b16 %v1040, %v1038
        %v1099 = vpack.c.b16 %v1043, %v1041
        %v1100 = vpack.c.b16 %v1044, %v1042
        %v1101 = vpack.c.b16 %v1047, %v1045
        %v1102 = vpack.c.b16 %v1048, %v1046
        %v1103 = vpack.c.b16 %v1051, %v1049
        %v1104 = vpack.c.b16 %v1052, %v1050
        %v1105 = vpack.c.b16 %v1055, %v1053
        %v1106 = vpack.c.b16 %v1056, %v1054
        %v1107 = vpack.c.b16 %v1059, %v1057
        %v1108 = vpack.c.b16 %v1060, %v1058
        %v1109 = vpack.c.b16 %v1063, %v1061
        %v1110 = vpack.c.b16 %v1064, %v1062
        %v1111 = vpack.c.b16 %v1067, %v1065
        %v1112 = vpack.c.b16 %v1068, %v1066
        %v1113 = vpack.c.b16 %v1071, %v1069
        %v1114 = vpack.c.b16 %v1072, %v1070
        %v1115 = vpack.c.b16 %v1075, %v1073
        %v1116 = vpack.c.b16 %v1076, %v1074
        %v1117 = vpack.c.b16 %v1079, %v1077
        %v1118 = vpack.c.b16 %v1080, %v1078
        %v1119 = vpack.c.b16 %v1083, %v1081
        %v1120 = vpack.c.b16 %v1084, %v1082
        %v1121 = vpack.c.b16 %v1087, %v1085
        %v1122 = vpack.c.b16 %v1088, %v1086
        %v1123 = vpack.c.b16 %v1091, %v1089
        %v1124 = vpack.c.b16 %v1092, %v1090
        %1157 = vmatprep.subr.bf16.mxu0 %v1094
        %1158 = vmatpush1.bf16.msra.mxu0 %v1093
        %1159 = vmatprep.subr.bf16.mxu0 %v1096
        %1160 = vmatpush1.bf16.msra.mxu0 %v1095
        %1161 = vmatprep.subr.bf16.mxu0 %v1098
        %1162 = vmatpush1.bf16.msra.mxu0 %v1097
        %1163 = vmatprep.subr.bf16.mxu0 %v1100
        %1164 = vmatpush1.bf16.msra.mxu0 %v1099
        %1165 = vmatprep.subr.bf16.mxu0 %v1102
        %1166 = vmatpush1.bf16.msra.mxu0 %v1101
        %1167 = vmatprep.subr.bf16.mxu0 %v1104
        %1168 = vmatpush1.bf16.msra.mxu0 %v1103
        %1169 = vmatprep.subr.bf16.mxu0 %v1106
        %1170 = vmatpush1.bf16.msra.mxu0 %v1105
        %1171 = vmatprep.subr.bf16.mxu0 %v1108
        %1172 = vmatpush1.bf16.msra.mxu0 %v1107
        %1173 = vmatprep.subr.bf16.mxu0 %v1110
        %1174 = vmatpush1.bf16.msra.mxu0 %v1109
        %1175 = vmatprep.subr.bf16.mxu0 %v1112
        %1176 = vmatpush1.bf16.msra.mxu0 %v1111
        %1177 = vmatprep.subr.bf16.mxu0 %v1114
        %1178 = vmatpush1.bf16.msra.mxu0 %v1113
        %1179 = vmatprep.subr.bf16.mxu0 %v1116
        %1180 = vmatpush1.bf16.msra.mxu0 %v1115
        %1181 = vmatprep.subr.bf16.mxu0 %v1118
        %1182 = vmatpush1.bf16.msra.mxu0 %v1117
        %1183 = vmatprep.subr.bf16.mxu0 %v1120
        %1184 = vmatpush1.bf16.msra.mxu0 %v1119
        %1185 = vmatprep.subr.bf16.mxu0 %v1122
        %1186 = vmatpush1.bf16.msra.mxu0 %v1121
        %1187 = vmatprep.subr.bf16.mxu0 %v1124
        %1188 = vmatpush1.bf16.msra.mxu0 %v1123
        %1189 = vmatprep.mubr.bf16.mxu0 %v940
        %1190 = vmatmul.mubr.bf16.gmra.mrb[0].mxu0 %v939
        %v1191 = vpop.f32.mrb[0].mxu0
        %v1192 = vadd.f32 %v990, %v1191
        %v1193 = vpop.f32.mrb[0].mxu0
        %v1194 = vadd.f32 %v994, %v1193
        %v1195 = vpop.f32.mrb[0].mxu0
        %v1196 = vadd.f32 %v990, %v1195
        %v1197 = vpop.f32.mrb[0].mxu0
        %v1198 = vadd.f32 %v994, %v1197
        %1199 = vmatprep.mubr.bf16.mxu0 %v942
        %1200 = vmatmul.mubr.bf16.gmra.mrb[0].mxu0 %v941
        %v1201 = vpop.f32.mrb[0].mxu0
        %v1202 = vadd.f32 %v990, %v1201
        %v1203 = vpop.f32.mrb[0].mxu0
        %v1204 = vadd.f32 %v994, %v1203
        %v1205 = vpop.f32.mrb[0].mxu0
        %v1206 = vadd.f32 %v990, %v1205
        %v1207 = vpop.f32.mrb[0].mxu0
        %v1208 = vadd.f32 %v994, %v1207
        %1209 = vmatprep.mubr.bf16.mxu0 %v944
        %1210 = vmatmul.mubr.bf16.gmra.mrb[0].mxu0 %v943
        %v1211 = vpop.f32.mrb[0].mxu0
        %v1212 = vadd.f32 %v990, %v1211
        %v1213 = vpop.f32.mrb[0].mxu0
        %v1214 = vadd.f32 %v994, %v1213
        %v1215 = vpop.f32.mrb[0].mxu0
        %v1216 = vadd.f32 %v990, %v1215
        %v1217 = vpop.f32.mrb[0].mxu0
        %v1218 = vadd.f32 %v994, %v1217
        %1219 = vmatprep.mubr.bf16.mxu0 %v946
        %1220 = vmatmul.mubr.bf16.gmra.mrb[0].mxu0 %v945
        %v1221 = vpop.f32.mrb[0].mxu0
        %v1222 = vadd.f32 %v990, %v1221
        %v1223 = vpop.f32.mrb[0].mxu0
        %v1224 = vadd.f32 %v994, %v1223
        %v1225 = vpop.f32.mrb[0].mxu0
        %v1226 = vadd.f32 %v990, %v1225
        %v1227 = vpop.f32.mrb[0].mxu0
        %v1228 = vadd.f32 %v994, %v1227
        %1229 = vmatprep.mubr.bf16.mxu0 %v948
        %1230 = vmatmul.mubr.bf16.gmra.mrb[0].mxu0 %v947
        %v1231 = vpop.f32.mrb[0].mxu0
        %v1232 = vadd.f32 %v990, %v1231
        %v1233 = vpop.f32.mrb[0].mxu0
        %v1234 = vadd.f32 %v994, %v1233
        %v1235 = vpop.f32.mrb[0].mxu0
        %v1236 = vadd.f32 %v990, %v1235
        %v1237 = vpop.f32.mrb[0].mxu0
        %v1238 = vadd.f32 %v994, %v1237
        %1239 = vmatprep.mubr.bf16.mxu0 %v950
        %1240 = vmatmul.mubr.bf16.gmra.mrb[0].mxu0 %v949
        %v1241 = vpop.f32.mrb[0].mxu0
        %v1242 = vadd.f32 %v990, %v1241
        %v1243 = vpop.f32.mrb[0].mxu0
        %v1244 = vadd.f32 %v994, %v1243
        %v1245 = vpop.f32.mrb[0].mxu0
        %v1246 = vadd.f32 %v990, %v1245
        %v1247 = vpop.f32.mrb[0].mxu0
        %v1248 = vadd.f32 %v994, %v1247
        %1249 = vmatprep.mubr.bf16.mxu0 %v952
        %1250 = vmatmul.mubr.bf16.gmra.mrb[0].mxu0 %v951
        %v1251 = vpop.f32.mrb[0].mxu0
        %v1252 = vadd.f32 %v990, %v1251
        %v1253 = vpop.f32.mrb[0].mxu0
        %v1254 = vadd.f32 %v994, %v1253
        %v1255 = vpop.f32.mrb[0].mxu0
        %v1256 = vadd.f32 %v990, %v1255
        %v1257 = vpop.f32.mrb[0].mxu0
        %v1258 = vadd.f32 %v994, %v1257
        %1259 = vdwg.mxu0
        %v1260 = vmax.f32 %v1192, 0.0
        %v1261 = vmax.f32 %v1194, 0.0
        %v1262 = vmax.f32 %v1196, 0.0
        %v1263 = vmax.f32 %v1198, 0.0
        %v1264 = vmax.f32 %v1202, 0.0
        %v1265 = vmax.f32 %v1204, 0.0
        %v1266 = vmax.f32 %v1206, 0.0
        %v1267 = vmax.f32 %v1208, 0.0
        %v1268 = vmax.f32 %v1212, 0.0
        %v1269 = vmax.f32 %v1214, 0.0
        %v1270 = vmax.f32 %v1216, 0.0
        %v1271 = vmax.f32 %v1218, 0.0
        %v1272 = vmax.f32 %v1222, 0.0
        %v1273 = vmax.f32 %v1224, 0.0
        %v1274 = vmax.f32 %v1226, 0.0
        %v1275 = vmax.f32 %v1228, 0.0
        %v1276 = vmax.f32 %v1232, 0.0
        %v1277 = vmax.f32 %v1234, 0.0
        %v1278 = vmax.f32 %v1236, 0.0
        %v1279 = vmax.f32 %v1238, 0.0
        %v1280 = vmax.f32 %v1242, 0.0
        %v1281 = vmax.f32 %v1244, 0.0
        %v1282 = vmax.f32 %v1246, 0.0
        %v1283 = vmax.f32 %v1248, 0.0
        %v1284 = vmax.f32 %v1252, 0.0
        %v1285 = vmax.f32 %v1254, 0.0
        %v1286 = vmax.f32 %v1256, 0.0
        %v1287 = vmax.f32 %v1258, 0.0
        %v1288 = vpack.c.bf16 %v1262, %v1260
        %v1289 = vpack.c.bf16 %v1263, %v1261
        %v1290 = vpack.c.bf16 %v1266, %v1264
        %v1291 = vpack.c.bf16 %v1267, %v1265
        %v1292 = vpack.c.bf16 %v1270, %v1268
        %v1293 = vpack.c.bf16 %v1271, %v1269
        %v1294 = vpack.c.bf16 %v1274, %v1272
        %v1295 = vpack.c.bf16 %v1275, %v1273
        %v1296 = vpack.c.bf16 %v1278, %v1276
        %v1297 = vpack.c.bf16 %v1279, %v1277
        %v1298 = vpack.c.bf16 %v1282, %v1280
        %v1299 = vpack.c.bf16 %v1283, %v1281
        %v1300 = vpack.c.bf16 %v1286, %v1284
        %v1301 = vpack.c.bf16 %v1287, %v1285
        %v1302 = vld [vmem:[%s5] sm:$0xf]
        %v1303 = vld [vmem:[%s5 + $0x4] sm:$0xf]
        %v1304 = vld [vmem:[%s5 + $0x8] sm:$0xf]
        %v1305 = vld [vmem:[%s5 + $0xc] sm:$0xf]
        %v1306 = vld [vmem:[%s5 + $0x10] sm:$0xf]
        %v1307 = vld [vmem:[%s5 + $0x14] sm:$0xf]
        %v1308 = vld [vmem:[%s5 + $0x18] sm:$0xf]
        %v1309 = vld [vmem:[%s5 + $0x1c] sm:$0xf]
        %v1310 = vld [vmem:[%s5 + $0x20] sm:$0xf]
        %v1311 = vld [vmem:[%s5 + $0x24] sm:$0xf]
        %v1312 = vld [vmem:[%s5 + $0x28] sm:$0xf]
        %v1313 = vld [vmem:[%s5 + $0x2c] sm:$0xf]
        %v1314 = vld [vmem:[%s5 + $0x30] sm:$0xf]
        %v1315 = vld [vmem:[%s5 + $0x34] sm:$0xf]
        %v1316 = vld [vmem:[%s5 + $0x38] sm:$0xf]
        %v1317 = vld [vmem:[%s5 + $0x3c] sm:$0xf]
        %v1318 = vld [vmem:[%s5 + $0x40] sm:$0xf]
        %v1319 = vld [vmem:[%s5 + $0x44] sm:$0xf]
        %v1320 = vld [vmem:[%s5 + $0x48] sm:$0xf]
        %v1321 = vld [vmem:[%s5 + $0x4c] sm:$0xf]
        %v1322 = vld [vmem:[%s5 + $0x50] sm:$0xf]
        %v1323 = vld [vmem:[%s5 + $0x54] sm:$0xf]
        %v1324 = vld [vmem:[%s5 + $0x58] sm:$0xf]
        %v1325 = vld [vmem:[%s5 + $0x5c] sm:$0xf]
        %v1326 = vld [vmem:[%s5 + $0x60] sm:$0xf]
        %v1327 = vld [vmem:[%s5 + $0x64] sm:$0xf]
        %v1328 = vld [vmem:[%s5 + $0x68] sm:$0xf]
        %v1329 = vld [vmem:[%s5 + $0x6c] sm:$0xf]
        %v1330 = vld [vmem:[%s5 + $0x70] sm:$0xf]
        %v1331 = vld [vmem:[%s5 + $0x74] sm:$0xf]
        %v1332 = vld [vmem:[%s5 + $0x78] sm:$0xf]
        %v1333 = vld [vmem:[%s5 + $0x7c] sm:$0xf]
        %v1334 = vld [vmem:[%s6] sm:$0x1]
        %v1336 = vlaneseq
        %v1337 = vshrl.u32 %v1336, 7
        %v1338 = vsub.s32 0, %v1337
        %v1339 = vrot.slane %v1334, %v1338
        %v1373 = vunpack.c.l.b16 %v1302
        %v1374 = vunpack.c.l.b16 %v1303
        %v1375 = vunpack.c.l.b16 %v1304
        %v1376 = vunpack.c.l.b16 %v1305
        %v1377 = vunpack.c.l.b16 %v1306
        %v1378 = vunpack.c.l.b16 %v1307
        %v1379 = vunpack.c.l.b16 %v1308
        %v1380 = vunpack.c.l.b16 %v1309
        %v1381 = vunpack.c.l.b16 %v1310
        %v1382 = vunpack.c.l.b16 %v1311
        %v1383 = vunpack.c.l.b16 %v1312
        %v1384 = vunpack.c.l.b16 %v1313
        %v1385 = vunpack.c.l.b16 %v1314
        %v1386 = vunpack.c.l.b16 %v1315
        %v1387 = vunpack.c.l.b16 %v1316
        %v1388 = vunpack.c.l.b16 %v1317
        %v1389 = vunpack.c.l.b16 %v1318
        %v1390 = vunpack.c.l.b16 %v1319
        %v1391 = vunpack.c.l.b16 %v1320
        %v1392 = vunpack.c.l.b16 %v1321
        %v1393 = vunpack.c.l.b16 %v1322
        %v1394 = vunpack.c.l.b16 %v1323
        %v1395 = vunpack.c.l.b16 %v1324
        %v1396 = vunpack.c.l.b16 %v1325
        %v1397 = vunpack.c.l.b16 %v1326
        %v1398 = vunpack.c.l.b16 %v1327
        %v1399 = vunpack.c.l.b16 %v1328
        %v1400 = vunpack.c.l.b16 %v1329
        %v1401 = vunpack.c.l.b16 %v1330
        %v1402 = vunpack.c.l.b16 %v1331
        %v1403 = vunpack.c.l.b16 %v1332
        %v1404 = vunpack.c.l.b16 %v1333
        %v1405 = vpack.c.b16 %v1374, %v1373
        %v1406 = vpack.c.b16 %v1376, %v1375
        %v1407 = vpack.c.b16 %v1378, %v1377
        %v1408 = vpack.c.b16 %v1380, %v1379
        %v1409 = vpack.c.b16 %v1382, %v1381
        %v1410 = vpack.c.b16 %v1384, %v1383
        %v1411 = vpack.c.b16 %v1386, %v1385
        %v1412 = vpack.c.b16 %v1388, %v1387
        %v1413 = vpack.c.b16 %v1390, %v1389
        %v1414 = vpack.c.b16 %v1392, %v1391
        %v1415 = vpack.c.b16 %v1394, %v1393
        %v1416 = vpack.c.b16 %v1396, %v1395
        %v1417 = vpack.c.b16 %v1398, %v1397
        %v1418 = vpack.c.b16 %v1400, %v1399
        %v1419 = vpack.c.b16 %v1402, %v1401
        %v1420 = vpack.c.b16 %v1404, %v1403
        %1437 = vmatprep.subr.bf16.mxu0 0
        %1438 = vmatpush1.bf16.msra.mxu0 %v1405
        %1439 = vmatprep.subr.bf16.mxu0 0
        %1440 = vmatpush1.bf16.msra.mxu0 %v1406
        %1441 = vmatprep.subr.bf16.mxu0 0
        %1442 = vmatpush1.bf16.msra.mxu0 %v1407
        %1443 = vmatprep.subr.bf16.mxu0 0
        %1444 = vmatpush1.bf16.msra.mxu0 %v1408
        %1445 = vmatprep.subr.bf16.mxu0 0
        %1446 = vmatpush1.bf16.msra.mxu0 %v1409
        %1447 = vmatprep.subr.bf16.mxu0 0
        %1448 = vmatpush1.bf16.msra.mxu0 %v1410
        %1449 = vmatprep.subr.bf16.mxu0 0
        %1450 = vmatpush1.bf16.msra.mxu0 %v1411
        %1451 = vmatprep.subr.bf16.mxu0 0
        %1452 = vmatpush1.bf16.msra.mxu0 %v1412
        %1453 = vmatprep.subr.bf16.mxu0 0
        %1454 = vmatpush1.bf16.msra.mxu0 %v1413
        %1455 = vmatprep.subr.bf16.mxu0 0
        %1456 = vmatpush1.bf16.msra.mxu0 %v1414
        %1457 = vmatprep.subr.bf16.mxu0 0
        %1458 = vmatpush1.bf16.msra.mxu0 %v1415
        %1459 = vmatprep.subr.bf16.mxu0 0
        %1460 = vmatpush1.bf16.msra.mxu0 %v1416
        %1461 = vmatprep.subr.bf16.mxu0 0
        %1462 = vmatpush1.bf16.msra.mxu0 %v1417
        %1463 = vmatprep.subr.bf16.mxu0 0
        %1464 = vmatpush1.bf16.msra.mxu0 %v1418
        %1465 = vmatprep.subr.bf16.mxu0 0
        %1466 = vmatpush1.bf16.msra.mxu0 %v1419
        %1467 = vmatprep.subr.bf16.mxu0 0
        %1468 = vmatpush1.bf16.msra.mxu0 %v1420
        %1469 = vmatprep.mubr.bf16.mxu0 %v1289
        %1470 = vmatmul.mubr.bf16.gmra.mrb[0].mxu0 %v1288
        %v1471 = vpop.f32.mrb[0].mxu0
        %v1472 = vadd.f32 %v1339, %v1471
        %v1473 = vpop.f32.mrb[0].mxu0
        %v1474 = vpop.f32.mrb[0].mxu0
        %v1475 = vadd.f32 %v1339, %v1474
        %v1476 = vpop.f32.mrb[0].mxu0
        %1477 = vmatprep.mubr.bf16.mxu0 %v1291
        %1478 = vmatmul.mubr.bf16.gmra.mrb[0].mxu0 %v1290
        %v1479 = vpop.f32.mrb[0].mxu0
        %v1480 = vadd.f32 %v1339, %v1479
        %v1481 = vpop.f32.mrb[0].mxu0
        %v1482 = vpop.f32.mrb[0].mxu0
        %v1483 = vadd.f32 %v1339, %v1482
        %v1484 = vpop.f32.mrb[0].mxu0
        %1485 = vmatprep.mubr.bf16.mxu0 %v1293
        %1486 = vmatmul.mubr.bf16.gmra.mrb[0].mxu0 %v1292
        %v1487 = vpop.f32.mrb[0].mxu0
        %v1488 = vadd.f32 %v1339, %v1487
        %v1489 = vpop.f32.mrb[0].mxu0
        %v1490 = vpop.f32.mrb[0].mxu0
        %v1491 = vadd.f32 %v1339, %v1490
        %v1492 = vpop.f32.mrb[0].mxu0
        %1493 = vmatprep.mubr.bf16.mxu0 %v1295
        %1494 = vmatmul.mubr.bf16.gmra.mrb[0].mxu0 %v1294
        %v1495 = vpop.f32.mrb[0].mxu0
        %v1496 = vadd.f32 %v1339, %v1495
        %v1497 = vpop.f32.mrb[0].mxu0
        %v1498 = vpop.f32.mrb[0].mxu0
        %v1499 = vadd.f32 %v1339, %v1498
        %v1500 = vpop.f32.mrb[0].mxu0
        %1501 = vmatprep.mubr.bf16.mxu0 %v1297
        %1502 = vmatmul.mubr.bf16.gmra.mrb[0].mxu0 %v1296
        %v1503 = vpop.f32.mrb[0].mxu0
        %v1504 = vadd.f32 %v1339, %v1503
        %v1505 = vpop.f32.mrb[0].mxu0
        %v1506 = vpop.f32.mrb[0].mxu0
        %v1507 = vadd.f32 %v1339, %v1506
        %v1508 = vpop.f32.mrb[0].mxu0
        %1509 = vmatprep.mubr.bf16.mxu0 %v1299
        %1510 = vmatmul.mubr.bf16.gmra.mrb[0].mxu0 %v1298
        %v1511 = vpop.f32.mrb[0].mxu0
        %v1512 = vadd.f32 %v1339, %v1511
        %v1513 = vpop.f32.mrb[0].mxu0
        %v1514 = vpop.f32.mrb[0].mxu0
        %v1515 = vadd.f32 %v1339, %v1514
        %v1516 = vpop.f32.mrb[0].mxu0
        %1517 = vmatprep.mubr.bf16.mxu0 %v1301
        %1518 = vmatmul.mubr.bf16.gmra.mrb[0].mxu0 %v1300
        %v1519 = vpop.f32.mrb[0].mxu0
        %v1520 = vadd.f32 %v1339, %v1519
        %v1521 = vpop.f32.mrb[0].mxu0
        %v1522 = vpop.f32.mrb[0].mxu0
        %v1523 = vadd.f32 %v1339, %v1522
        %v1524 = vpop.f32.mrb[0].mxu0
        %1525 = vdwg.mxu0
        %vm1526 = vcmask 261120
        %v1527 = vsel %vm1526, %v1472, -inf
        %1528 = vmax.xlane.f32.xlu0 %v1527
        %v1529 = vpop.xlane.xlu0 %1528
        %v1530 = vsel %vm1526, %v1475, -inf
        %1531 = vmax.xlane.f32.xlu0 %v1530
        %v1532 = vpop.xlane.xlu0 %1531
        %v1533 = vsel %vm1526, %v1480, -inf
        %1534 = vmax.xlane.f32.xlu0 %v1533
        %v1535 = vpop.xlane.xlu0 %1534
        %v1536 = vsel %vm1526, %v1483, -inf
        %1537 = vmax.xlane.f32.xlu0 %v1536
        %v1538 = vpop.xlane.xlu0 %1537
        %v1539 = vsel %vm1526, %v1488, -inf
        %1540 = vmax.xlane.f32.xlu0 %v1539
        %v1541 = vpop.xlane.xlu0 %1540
        %v1542 = vsel %vm1526, %v1491, -inf
        %1543 = vmax.xlane.f32.xlu0 %v1542
        %v1544 = vpop.xlane.xlu0 %1543
        %v1545 = vsel %vm1526, %v1496, -inf
        %1546 = vmax.xlane.f32.xlu0 %v1545
        %v1547 = vpop.xlane.xlu0 %1546
        %v1548 = vsel %vm1526, %v1499, -inf
        %1549 = vmax.xlane.f32.xlu0 %v1548
        %v1550 = vpop.xlane.xlu0 %1549
        %v1551 = vsel %vm1526, %v1504, -inf
        %1552 = vmax.xlane.f32.xlu0 %v1551
        %v1553 = vpop.xlane.xlu0 %1552
        %v1554 = vsel %vm1526, %v1507, -inf
        %1555 = vmax.xlane.f32.xlu0 %v1554
        %v1556 = vpop.xlane.xlu0 %1555
        %v1557 = vsel %vm1526, %v1512, -inf
        %1558 = vmax.xlane.f32.xlu0 %v1557
        %v1559 = vpop.xlane.xlu0 %1558
        %v1560 = vsel %vm1526, %v1515, -inf
        %1561 = vmax.xlane.f32.xlu0 %v1560
        %v1562 = vpop.xlane.xlu0 %1561
        %v1563 = vsel %vm1526, %v1520, -inf
        %1564 = vmax.xlane.f32.xlu0 %v1563
        %v1565 = vpop.xlane.xlu0 %1564
        %v1566 = vsel %vm1526, %v1523, -inf
        %1567 = vmax.xlane.f32.xlu0 %v1566
        %v1568 = vpop.xlane.xlu0 %1567
        %v1569 = vsub.f32 %v1472, %v1529
        %v1570 = vsub.f32 %v1475, %v1532
        %v1571 = vsub.f32 %v1480, %v1535
        %v1572 = vsub.f32 %v1483, %v1538
        %v1573 = vsub.f32 %v1488, %v1541
        %v1574 = vsub.f32 %v1491, %v1544
        %v1575 = vsub.f32 %v1496, %v1547
        %v1576 = vsub.f32 %v1499, %v1550
        %v1577 = vsub.f32 %v1504, %v1553
        %v1578 = vsub.f32 %v1507, %v1556
        %v1579 = vsub.f32 %v1512, %v1559
        %v1580 = vsub.f32 %v1515, %v1562
        %v1581 = vsub.f32 %v1520, %v1565
        %v1582 = vsub.f32 %v1523, %v1568
        %v1583 = vmul.f32 %v1569, 1.442695
        %v1584 = vpow.pop %v1583
        %v1585 = vmul.f32 %v1570, 1.442695
        %v1586 = vpow.pop %v1585
        %v1587 = vmul.f32 %v1571, 1.442695
        %v1588 = vpow.pop %v1587
        %v1589 = vmul.f32 %v1572, 1.442695
        %v1590 = vpow.pop %v1589
        %v1591 = vmul.f32 %v1573, 1.442695
        %v1592 = vpow.pop %v1591
        %v1593 = vmul.f32 %v1574, 1.442695
        %v1594 = vpow.pop %v1593
        %v1595 = vmul.f32 %v1575, 1.442695
        %v1596 = vpow.pop %v1595
        %v1597 = vmul.f32 %v1576, 1.442695
        %v1598 = vpow.pop %v1597
        %v1599 = vmul.f32 %v1577, 1.442695
        %v1600 = vpow.pop %v1599
        %v1601 = vmul.f32 %v1578, 1.442695
        %v1602 = vpow.pop %v1601
        %v1603 = vmul.f32 %v1579, 1.442695
        %v1604 = vpow.pop %v1603
        %v1605 = vmul.f32 %v1580, 1.442695
        %v1606 = vpow.pop %v1605
        %v1607 = vmul.f32 %v1581, 1.442695
        %v1608 = vpow.pop %v1607
        %v1609 = vmul.f32 %v1582, 1.442695
        %v1610 = vpow.pop %v1609
        %v1611 = vsel %vm1526, %v1584, 0.0
        %1612 = vadd.xlane.f32.xlu0 %v1611
        %v1613 = vpop.xlane.xlu0 %1612
        %v1614 = vsel %vm1526, %v1586, 0.0
        %1615 = vadd.xlane.f32.xlu0 %v1614
        %v1616 = vpop.xlane.xlu0 %1615
        %v1617 = vsel %vm1526, %v1588, 0.0
        %1618 = vadd.xlane.f32.xlu0 %v1617
        %v1619 = vpop.xlane.xlu0 %1618
        %v1620 = vsel %vm1526, %v1590, 0.0
        %1621 = vadd.xlane.f32.xlu0 %v1620
        %v1622 = vpop.xlane.xlu0 %1621
        %v1623 = vsel %vm1526, %v1592, 0.0
        %1624 = vadd.xlane.f32.xlu0 %v1623
        %v1625 = vpop.xlane.xlu0 %1624
        %v1626 = vsel %vm1526, %v1594, 0.0
        %1627 = vadd.xlane.f32.xlu0 %v1626
        %v1628 = vpop.xlane.xlu0 %1627
        %v1629 = vsel %vm1526, %v1596, 0.0
        %1630 = vadd.xlane.f32.xlu0 %v1629
        %v1631 = vpop.xlane.xlu0 %1630
        %v1632 = vsel %vm1526, %v1598, 0.0
        %1633 = vadd.xlane.f32.xlu0 %v1632
        %v1634 = vpop.xlane.xlu0 %1633
        %v1635 = vsel %vm1526, %v1600, 0.0
        %1636 = vadd.xlane.f32.xlu0 %v1635
        %v1637 = vpop.xlane.xlu0 %1636
        %v1638 = vsel %vm1526, %v1602, 0.0
        %1639 = vadd.xlane.f32.xlu0 %v1638
        %v1640 = vpop.xlane.xlu0 %1639
        %v1641 = vsel %vm1526, %v1604, 0.0
        %1642 = vadd.xlane.f32.xlu0 %v1641
        %v1643 = vpop.xlane.xlu0 %1642
        %v1644 = vsel %vm1526, %v1606, 0.0
        %1645 = vadd.xlane.f32.xlu0 %v1644
        %v1646 = vpop.xlane.xlu0 %1645
        %v1647 = vsel %vm1526, %v1608, 0.0
        %1648 = vadd.xlane.f32.xlu0 %v1647
        %v1649 = vpop.xlane.xlu0 %1648
        %v1650 = vsel %vm1526, %v1610, 0.0
        %1651 = vadd.xlane.f32.xlu0 %v1650
        %v1652 = vpop.xlane.xlu0 %1651
        %v1653 = vrcp.pop %v1613
        %v1654 = vrcp.pop %v1616
        %v1655 = vrcp.pop %v1619
        %v1656 = vrcp.pop %v1622
        %v1657 = vrcp.pop %v1625
        %v1658 = vrcp.pop %v1628
        %v1659 = vrcp.pop %v1631
        %v1660 = vrcp.pop %v1634
        %v1661 = vrcp.pop %v1637
        %v1662 = vrcp.pop %v1640
        %v1663 = vrcp.pop %v1643
        %v1664 = vrcp.pop %v1646
        %v1665 = vrcp.pop %v1649
        %v1666 = vrcp.pop %v1652
        %v1667 = vmul.f32 %v1584, %v1653
        %v1668 = vmul.f32 %v1586, %v1654
        %v1669 = vmul.f32 %v1588, %v1655
        %v1670 = vmul.f32 %v1590, %v1656
        %v1671 = vmul.f32 %v1592, %v1657
        %v1672 = vmul.f32 %v1594, %v1658
        %v1673 = vmul.f32 %v1596, %v1659
        %v1674 = vmul.f32 %v1598, %v1660
        %v1675 = vmul.f32 %v1600, %v1661
        %v1676 = vmul.f32 %v1602, %v1662
        %v1677 = vmul.f32 %v1604, %v1663
        %v1678 = vmul.f32 %v1606, %v1664
        %v1679 = vmul.f32 %v1608, %v1665
        %v1680 = vmul.f32 %v1610, %v1666
        %1681 = vst.msk [vmem:[%s329] sm:$0xff] %vm1526, %v1667
        %1682 = vst.msk [vmem:[%s329 + $0x8] sm:$0xff] %vm1526, %v1668
        %1683 = vst.msk [vmem:[%s329 + $0x10] sm:$0xff] %vm1526, %v1669
        %1684 = vst.msk [vmem:[%s329 + $0x18] sm:$0xff] %vm1526, %v1670
        %1685 = vst.msk [vmem:[%s329 + $0x20] sm:$0xff] %vm1526, %v1671
        %1686 = vst.msk [vmem:[%s329 + $0x28] sm:$0xff] %vm1526, %v1672
        %1687 = vst.msk [vmem:[%s329 + $0x30] sm:$0xff] %vm1526, %v1673
        %1688 = vst.msk [vmem:[%s329 + $0x38] sm:$0xff] %vm1526, %v1674
        %1689 = vst.msk [vmem:[%s329 + $0x40] sm:$0xff] %vm1526, %v1675
        %1690 = vst.msk [vmem:[%s329 + $0x48] sm:$0xff] %vm1526, %v1676
        %1691 = vst.msk [vmem:[%s329 + $0x50] sm:$0xff] %vm1526, %v1677
        %1692 = vst.msk [vmem:[%s329 + $0x58] sm:$0xff] %vm1526, %v1678
        %1693 = vst.msk [vmem:[%s329 + $0x60] sm:$0xff] %vm1526, %v1679
        %1694 = vst.msk [vmem:[%s329 + $0x68] sm:$0xff] %vm1526, %v1680
        %s1695 = sand.u32 %s182, 1
        %s1696 = sand.u32 %s182, 1
        %s1697 = smul.addr %s1696, 112
        %s1698 = scalar_lea.vmem [#allocation7], %s1697
        // Predicated region
        $region61: #{tpu_custom_call.1} parent=47 // pred_check
          %p1699 = pneg %p192
        $region62: #{tpu_custom_call.1} parent=47 // pred_check_branch
          %1701 = sbr.rel (%p1699) target = $region64
        $region63: #{tpu_custom_call.1} parent=47 // pred_region
          %s1702 = smul.u32 14, %s22
          %s1703 = ssub.s32 25, %s1702
          %p1704 = scmp.lt.s32.totalorder %s1703, 14
          %s1705 = scalar_select %p1704, %s1703, 14
          %s1706 = smul.u32 128, %s1705
          %p1707 = scmp.ne.s32.totalorder 0, %s1706
          %s1708 = smul.addr %s1702, 8
          %s1709 = scalar_lea.vmem %s7, %s1708
          // Predicated region
          $region65: #{tpu_custom_call.1} parent=63 // pred_check
            %p1710 = pneg %p1707
          $region66: #{tpu_custom_call.1} parent=63 // pred_check_branch
            %1712 = sbr.rel (%p1710) target = $region68
          $region67: #{tpu_custom_call.1} parent=63 // pred_region
            // Predicated region
            $region69: #{tpu_custom_call.1} parent=67 // pred_check
              _
            $region70: #{tpu_custom_call.1} parent=67 // pred_check_branch
              %1714 = sbr.rel (0) target = $region72
            $region71: #{tpu_custom_call.1} parent=67 // pred_region
              // Predicated region
              $region91: #{tpu_custom_call.1} parent=71 // pred_check
                _
              $region92: #{tpu_custom_call.1} parent=71 // pred_check_branch
                %1790 = sbr.rel (0) target = $region94
              $region93: #{tpu_custom_call.1} parent=71 // pred_region
                %s1791 = sdiv.u32.pop %s1705, 14
                %s1792 = srem.u32.pop %s1705, 14
                // While loop
                $region95: #{tpu_custom_call.1} parent=93 // loop_pre_header
                  _
                $region96: #{tpu_custom_call.1} parent=93 // loop_header
                  %s1794 = sphi 0, %s1796
                  %p1795 = scmp.ge.s32.totalorder %s1794, %s1791
                  %s1799 = sphi 0, %s1832
                  %s1800 = sphi %s1698, %s1835
                  %s1801 = sphi %s1709, %s1836
                $region97: #{tpu_custom_call.1} parent=93 // loop_header_branch
                  %1798 = sbr.rel (%p1795) target = $region101
                $region98: #{tpu_custom_call.1} parent=93 // loop_body
                  %v1802 = vld [vmem:[%s1800] sm:$0xff]
                  %1803 = vst [vmem:[%s1801] sm:$0xff] %v1802
                  %v1804 = vld [vmem:[%s1800 + $0x8] sm:$0xff]
                  %1805 = vst [vmem:[%s1801 + $0x8] sm:$0xff] %v1804
                  %v1806 = vld [vmem:[%s1800 + $0x10] sm:$0xff]
                  %1807 = vst [vmem:[%s1801 + $0x10] sm:$0xff] %v1806
                  %v1808 = vld [vmem:[%s1800 + $0x18] sm:$0xff]
                  %1809 = vst [vmem:[%s1801 + $0x18] sm:$0xff] %v1808
                  %v1810 = vld [vmem:[%s1800 + $0x20] sm:$0xff]
                  %1811 = vst [vmem:[%s1801 + $0x20] sm:$0xff] %v1810
                  %v1812 = vld [vmem:[%s1800 + $0x28] sm:$0xff]
                  %1813 = vst [vmem:[%s1801 + $0x28] sm:$0xff] %v1812
                  %v1814 = vld [vmem:[%s1800 + $0x30] sm:$0xff]
                  %1815 = vst [vmem:[%s1801 + $0x30] sm:$0xff] %v1814
                  %v1816 = vld [vmem:[%s1800 + $0x38] sm:$0xff]
                  %1817 = vst [vmem:[%s1801 + $0x38] sm:$0xff] %v1816
                  %v1818 = vld [vmem:[%s1800 + $0x40] sm:$0xff]
                  %1819 = vst [vmem:[%s1801 + $0x40] sm:$0xff] %v1818
                  %v1820 = vld [vmem:[%s1800 + $0x48] sm:$0xff]
                  %1821 = vst [vmem:[%s1801 + $0x48] sm:$0xff] %v1820
                  %v1822 = vld [vmem:[%s1800 + $0x50] sm:$0xff]
                  %1823 = vst [vmem:[%s1801 + $0x50] sm:$0xff] %v1822
                  %v1824 = vld [vmem:[%s1800 + $0x58] sm:$0xff]
                  %1825 = vst [vmem:[%s1801 + $0x58] sm:$0xff] %v1824
                  %v1826 = vld [vmem:[%s1800 + $0x60] sm:$0xff]
                  %1827 = vst [vmem:[%s1801 + $0x60] sm:$0xff] %v1826
                  %v1828 = vld [vmem:[%s1800 + $0x68] sm:$0xff]
                  %1829 = vst [vmem:[%s1801 + $0x68] sm:$0xff] %v1828
                  %s1830 = sadd.s32 1, %s1799
                  %p1831 = scmp.ge.s32.totalorder %s1830, %s1791
                  %s1832 = scalar_select %p1831, 0, %s1830
                  %s1833 = smul.u32 %s1832, 112
                  %s1834 = smul.u32 %s1832, 112
                  %s1835 = scalar_lea.vmem %s1698, %s1833 [#allocation7]
                  %s1836 = scalar_lea.vmem %s1709, %s1834
                $region99: #{tpu_custom_call.1} parent=93 // loop_footer
                  %s1796 = sadd.s32 %s1794, 1
                $region100: #{tpu_custom_call.1} parent=93 // loop_footer_branch
                  %1793 = sbr.rel target = $region96
                $region101: #{tpu_custom_call.1} parent=93 // loop_exit
                  _
                %s1837 = sdiv.u32.pop %s1705, 14
                %s1838 = srem.u32.pop %s1705, 14
                %s1839 = smul.u32 %s1837, 14
                %s1840 = smul.u32 8, %s1839
                %s1841 = scalar_lea.vmem %s1698, %s1840 [#allocation7]
                %s1842 = smul.u32 8, %s1839
                %s1843 = scalar_lea.vmem %s1709, %s1842
                // While loop
                $region102: #{tpu_custom_call.1} parent=93 // loop_pre_header
                  _
                $region103: #{tpu_custom_call.1} parent=93 // loop_header
                  %s1845 = sphi 0, %s1847
                  %p1846 = scmp.ge.s32.totalorder %s1845, %s1838
                  %s1850 = sphi 0, %s1857
                  %s1851 = sphi %s1841, %s1860
                  %s1852 = sphi %s1843, %s1861
                $region104: #{tpu_custom_call.1} parent=93 // loop_header_branch
                  %1849 = sbr.rel (%p1846) target = $region108
                $region105: #{tpu_custom_call.1} parent=93 // loop_body
                  %v1853 = vld [vmem:[%s1851] sm:$0xff]
                  %1854 = vst [vmem:[%s1852] sm:$0xff] %v1853
                  %s1855 = sadd.s32 1, %s1850
                  %p1856 = scmp.ge.s32.totalorder %s1855, %s1838
                  %s1857 = scalar_select %p1856, 0, %s1855
                  %s1858 = smul.u32 %s1857, 8
                  %s1859 = smul.u32 %s1857, 8
                  %s1860 = scalar_lea.vmem %s1841, %s1858 [#allocation7]
                  %s1861 = scalar_lea.vmem %s1843, %s1859
                $region106: #{tpu_custom_call.1} parent=93 // loop_footer
                  %s1847 = sadd.s32 %s1845, 1
                $region107: #{tpu_custom_call.1} parent=93 // loop_footer_branch
                  %1844 = sbr.rel target = $region103
                $region108: #{tpu_custom_call.1} parent=93 // loop_exit
                  _
              $region94: #{tpu_custom_call.1} parent=71 // pred_fallthru
                _
              // Predicated region
              $region109: #{tpu_custom_call.1} parent=71 // pred_check
                _
              $region110: #{tpu_custom_call.1} parent=71 // pred_check_branch
                %1863 = sbr.rel target = $region112
              $region111: #{tpu_custom_call.1} parent=71 // pred_region
                _
              $region112: #{tpu_custom_call.1} parent=71 // pred_fallthru
                _
            $region72: #{tpu_custom_call.1} parent=67 // pred_fallthru
              _
            // Predicated region
            $region73: #{tpu_custom_call.1} parent=67 // pred_check
              _
            $region74: #{tpu_custom_call.1} parent=67 // pred_check_branch
              %1716 = sbr.rel target = $region76
            $region75: #{tpu_custom_call.1} parent=67 // pred_region
              %s1718 = sdiv.u32.pop %s1705, 14
              %s1719 = srem.u32.pop %s1705, 14
              // While loop
              $region77: #{tpu_custom_call.1} parent=75 // loop_pre_header
                _
              $region78: #{tpu_custom_call.1} parent=75 // loop_header
                %s1721 = sphi 0, %s1723
                %p1722 = scmp.ge.s32.totalorder %s1721, %s1718
                %s1726 = sphi 0, %s1759
                %s1727 = sphi %s1698, %s1762
                %s1728 = sphi %s1709, %s1763
              $region79: #{tpu_custom_call.1} parent=75 // loop_header_branch
                %1725 = sbr.rel (%p1722) target = $region83
              $region80: #{tpu_custom_call.1} parent=75 // loop_body
                %v1729 = vld [vmem:[%s1727] sm:$0xff]
                %1730 = vst [vmem:[%s1728] sm:$0xff] %v1729
                %v1731 = vld [vmem:[%s1727 + $0x8] sm:$0xff]
                %1732 = vst [vmem:[%s1728 + $0x8] sm:$0xff] %v1731
                %v1733 = vld [vmem:[%s1727 + $0x10] sm:$0xff]
                %1734 = vst [vmem:[%s1728 + $0x10] sm:$0xff] %v1733
                %v1735 = vld [vmem:[%s1727 + $0x18] sm:$0xff]
                %1736 = vst [vmem:[%s1728 + $0x18] sm:$0xff] %v1735
                %v1737 = vld [vmem:[%s1727 + $0x20] sm:$0xff]
                %1738 = vst [vmem:[%s1728 + $0x20] sm:$0xff] %v1737
                %v1739 = vld [vmem:[%s1727 + $0x28] sm:$0xff]
                %1740 = vst [vmem:[%s1728 + $0x28] sm:$0xff] %v1739
                %v1741 = vld [vmem:[%s1727 + $0x30] sm:$0xff]
                %1742 = vst [vmem:[%s1728 + $0x30] sm:$0xff] %v1741
                %v1743 = vld [vmem:[%s1727 + $0x38] sm:$0xff]
                %1744 = vst [vmem:[%s1728 + $0x38] sm:$0xff] %v1743
                %v1745 = vld [vmem:[%s1727 + $0x40] sm:$0xff]
                %1746 = vst [vmem:[%s1728 + $0x40] sm:$0xff] %v1745
                %v1747 = vld [vmem:[%s1727 + $0x48] sm:$0xff]
                %1748 = vst [vmem:[%s1728 + $0x48] sm:$0xff] %v1747
                %v1749 = vld [vmem:[%s1727 + $0x50] sm:$0xff]
                %1750 = vst [vmem:[%s1728 + $0x50] sm:$0xff] %v1749
                %v1751 = vld [vmem:[%s1727 + $0x58] sm:$0xff]
                %1752 = vst [vmem:[%s1728 + $0x58] sm:$0xff] %v1751
                %v1753 = vld [vmem:[%s1727 + $0x60] sm:$0xff]
                %1754 = vst [vmem:[%s1728 + $0x60] sm:$0xff] %v1753
                %v1755 = vld [vmem:[%s1727 + $0x68] sm:$0xff]
                %1756 = vst [vmem:[%s1728 + $0x68] sm:$0xff] %v1755
                %s1757 = sadd.s32 1, %s1726
                %p1758 = scmp.ge.s32.totalorder %s1757, %s1718
                %s1759 = scalar_select %p1758, 0, %s1757
                %s1760 = smul.u32 %s1759, 112
                %s1761 = smul.u32 %s1759, 112
                %s1762 = scalar_lea.vmem %s1698, %s1760 [#allocation7]
                %s1763 = scalar_lea.vmem %s1709, %s1761
              $region81: #{tpu_custom_call.1} parent=75 // loop_footer
                %s1723 = sadd.s32 %s1721, 1
              $region82: #{tpu_custom_call.1} parent=75 // loop_footer_branch
                %1720 = sbr.rel target = $region78
              $region83: #{tpu_custom_call.1} parent=75 // loop_exit
                _
              %s1764 = sdiv.u32.pop %s1705, 14
              %s1765 = srem.u32.pop %s1705, 14
              %s1766 = smul.u32 %s1764, 14
              %s1767 = smul.u32 8, %s1766
              %s1768 = scalar_lea.vmem %s1698, %s1767 [#allocation7]
              %s1769 = smul.u32 8, %s1766
              %s1770 = scalar_lea.vmem %s1709, %s1769
              // While loop
              $region84: #{tpu_custom_call.1} parent=75 // loop_pre_header
                _
              $region85: #{tpu_custom_call.1} parent=75 // loop_header
                %s1772 = sphi 0, %s1774
                %p1773 = scmp.ge.s32.totalorder %s1772, %s1765
                %s1777 = sphi 0, %s1784
                %s1778 = sphi %s1768, %s1787
                %s1779 = sphi %s1770, %s1788
              $region86: #{tpu_custom_call.1} parent=75 // loop_header_branch
                %1776 = sbr.rel (%p1773) target = $region90
              $region87: #{tpu_custom_call.1} parent=75 // loop_body
                %v1780 = vld [vmem:[%s1778] sm:$0xff]
                %1781 = vst [vmem:[%s1779] sm:$0xff] %v1780
                %s1782 = sadd.s32 1, %s1777
                %p1783 = scmp.ge.s32.totalorder %s1782, %s1765
                %s1784 = scalar_select %p1783, 0, %s1782
                %s1785 = smul.u32 %s1784, 8
                %s1786 = smul.u32 %s1784, 8
                %s1787 = scalar_lea.vmem %s1768, %s1785 [#allocation7]
                %s1788 = scalar_lea.vmem %s1770, %s1786
              $region88: #{tpu_custom_call.1} parent=75 // loop_footer
                %s1774 = sadd.s32 %s1772, 1
              $region89: #{tpu_custom_call.1} parent=75 // loop_footer_branch
                %1771 = sbr.rel target = $region85
              $region90: #{tpu_custom_call.1} parent=75 // loop_exit
                _
            $region76: #{tpu_custom_call.1} parent=67 // pred_fallthru
              _
          $region68: #{tpu_custom_call.1} parent=63 // pred_fallthru
            _
          %1864 = vnop
        $region64: #{tpu_custom_call.1} parent=47 // pred_fallthru
          _
      $region48: #{tpu_custom_call.1} parent=5 // pred_fallthru
        _
      %p1865 = scmp.le.s32.totalorder 2, %s17
      // Predicated region
      $region113: #{tpu_custom_call.1} parent=5 // pred_check
        %p1866 = pneg %p1865
      $region114: #{tpu_custom_call.1} parent=5 // pred_check_branch
        %1868 = sbr.rel (%p1866) target = $region116
      $region115: #{tpu_custom_call.1} parent=5 // pred_region
        %s1869 = ssub.s32 %s17, 2
        // Predicated region
        $region117: #{tpu_custom_call.1} parent=115 // pred_check
          %p1870 = pneg %p198
        $region118: #{tpu_custom_call.1} parent=115 // pred_check_branch
          %1872 = sbr.rel (%p1870) target = $region120
        $region119: #{tpu_custom_call.1} parent=115 // pred_region
          %s1873 = sand.u32 %s183, 1
          %s1874 = sand.u32 %s183, 1
          %s1875 = smul.addr %s1874, 112
          %s1876 = scalar_lea.vmem [#allocation7], %s1875
        $region120: #{tpu_custom_call.1} parent=115 // pred_fallthru
          _
      $region116: #{tpu_custom_call.1} parent=5 // pred_fallthru
        _
    $region6: #{tpu_custom_call.1} parent=1 // loop_footer
      %s21 = sadd.s32 1, %s17
    $region7: #{tpu_custom_call.1} parent=1 // loop_footer_branch
      %16 = sbr.rel target = $region3
    $region8: #{tpu_custom_call.1} parent=1 // loop_exit
      _
    %1877 = vsyncpa [#allocation3], 1
    %s1878 = scalar_lea.sflag [#allocation3], 1
    %1879 = vsyncpa %s1878, 1
    %1880 = vsyncpa [#allocation5], 1

</llo_original>
